<compile_context>
chip_gen: v6e
topology: v6e:2x2x1
jax: 0.10.0
libtpu: 0.0.40
codegen_flags: <defaults>
</compile_context>

<pallas_src>
from functools import partial

import jax
import jax.numpy as jnp
from jax import lax
from jax.experimental import pallas as pl
from jax.experimental.pallas import tpu as pltpu


def _round_up(x, m):
    return -(-x // m) * m


def _pick_tile(dim, target, mult=128):
    """Largest tile <= target that divides dim, preferring multiples of mult."""
    if dim <= target:
        return dim
    start = target - (target % mult)
    for t in range(start, 0, -mult):
        if dim % t == 0:
            return t
    for t in range(target, 0, -1):
        if dim % t == 0:
            return t
    return dim


# ----------------------------------------------------------------------------
# Kernel 1: fused conv3x3(pad=1) + bias + ReLU + maxpool2x2   (one image/step)
# ----------------------------------------------------------------------------
def _conv_relu_pool_kernel(xd_ref, w_ref, b_ref, o_ref, *, hp, half):
    """xd_ref: (H+2, Lpad)       padded input rows, deinterleaved: rows
                                 [0:hp+1] = even padded rows, [hp+1:] = odd (bf16)
       w_ref:  (3, Lpad, 2*half) banded conv weights (one per kh); output
                                 columns ordered [even-w | odd-w]         (bf16)
       b_ref:  (1, half)         per-channel bias repeated over pooled w   (f32)
       o_ref:  (hp, half)        pooled output, lane = c*(W/2) + w        (bf16)
    """
    e0 = xd_ref[pl.ds(0, hp), :]            # padded rows 0, 2, ..., H-2
    e1 = xd_ref[pl.ds(1, hp), :]            # padded rows 2, 4, ..., H
    o0 = xd_ref[pl.ds(hp + 1, hp), :]       # padded rows 1, 3, ..., H-1
    o1 = xd_ref[pl.ds(hp + 2, hp), :]       # padded rows 3, 5, ..., H+1
    w0, w1, w2 = w_ref[0], w_ref[1], w_ref[2]

    # Even / odd conv output rows as two banded-matmul accumulations (f32 acc,
    # bf16 MXU operands -- inputs/weights are already bf16, no in-kernel casts).
    acc_e = (jnp.dot(e0, w0, preferred_element_type=jnp.float32)
             + jnp.dot(o0, w1, preferred_element_type=jnp.float32)
             + jnp.dot(e1, w2, preferred_element_type=jnp.float32))
    acc_o = (jnp.dot(o0, w0, preferred_element_type=jnp.float32)
             + jnp.dot(e1, w1, preferred_element_type=jnp.float32)
             + jnp.dot(o1, w2, preferred_element_type=jnp.float32))

    m = jnp.maximum(acc_e, acc_o)                    # 2x1 pool over h (rows)
    m = jnp.maximum(m[:, :half], m[:, half:])        # 1x2 pool over w (lanes)
    # bias + ReLU commute with the max (same bias across each 2x2 window).
    o_ref[...] = jnp.maximum(m + b_ref[...], 0.0).astype(o_ref.dtype)


def conv_relu_pool(xd, bigw, bias_row, *, hp, half):
    """(N, H+2, Lpad) deinterleaved padded activations -> (N, H/2, half) bf16."""
    N, hpad, lpad = xd.shape
    return pl.pallas_call(
        partial(_conv_relu_pool_kernel, hp=hp, half=half),
        out_shape=jax.ShapeDtypeStruct((N, hp, half), jnp.bfloat16),
        grid=(N,),
        in_specs=[
            pl.BlockSpec((None, hpad, lpad), lambda b: (b, 0, 0)),
            pl.BlockSpec(bigw.shape, lambda b: (0, 0, 0)),
            pl.BlockSpec(bias_row.shape, lambda b: (0, 0)),
        ],
        out_specs=pl.BlockSpec((None, hp, half), lambda b: (b, 0, 0)),
        # At 600x600 add a w-block grid axis, pl.Buffered(1) on bigw/bias, and
        # vmem_limit_bytes (~100 MiB v5e/v6e, ~56 MiB v7x); not needed at 16x16.
        compiler_params=pltpu.CompilerParams(dimension_semantics=("parallel",)),
    )(xd, bigw, bias_row)


# ----------------------------------------------------------------------------
# Kernel 2: fused fc1 + bias + ReLU + fc2 + bias (K-tiled, resident f32 acc)
# ----------------------------------------------------------------------------
def _mlp_head_kernel(x_ref, w1_ref, b1_ref, w2_ref, b2_ref, o_ref, acc_ref):
    k = pl.program_id(1)

    @pl.when(k == 0)
    def _():
        acc_ref[...] = jnp.zeros_like(acc_ref)

    acc_ref[...] += jnp.dot(x_ref[...], w1_ref[...],
                            preferred_element_type=jnp.float32)

    @pl.when(k == pl.num_programs(1) - 1)
    def _():
        h = jnp.maximum(acc_ref[...] + b1_ref[...], 0.0).astype(jnp.bfloat16)
        o_ref[...] = (jnp.dot(h, w2_ref[...], preferred_element_type=jnp.float32)
                      + b2_ref[...]).astype(o_ref.dtype)


def mlp_head(x, w1, b1, w2, b2, *, tk_target=8192):
    """relu(x @ w1 + b1) @ w2 + b2; all matmul operands pre-cast to bf16."""
    M, K = x.shape
    K2, H1 = w1.shape
    assert K == K2
    H1b, N2 = w2.shape
    assert H1b == H1
    tk = _pick_tile(K, tk_target)   # never falls back to tk=K beyond the target
    tm = M                          # batch fits one block at these sizes
    # At large batch / on v7x, split tm (or K with partial accumulators) so the
    # second TensorCore gets a parallel axis.
    return pl.pallas_call(
        _mlp_head_kernel,
        out_shape=jax.ShapeDtypeStruct((M, N2), jnp.float32),
        grid=(M // tm, K // tk),
        in_specs=[
            pl.BlockSpec((tm, tk), lambda i, k: (i, k)),
            pl.BlockSpec((tk, H1), lambda i, k: (k, 0)),
            pl.BlockSpec((1, H1), lambda i, k: (0, 0)),
            pl.BlockSpec((H1, N2), lambda i, k: (0, 0)),
            pl.BlockSpec((1, N2), lambda i, k: (0, 0)),
        ],
        out_specs=pl.BlockSpec((tm, N2), lambda i, k: (i, 0)),
        scratch_shapes=[pltpu.VMEM((tm, H1), jnp.float32)],
        compiler_params=pltpu.CompilerParams(
            dimension_semantics=("parallel", "arbitrary")),
    )(x, w1, b1, w2, b2)


# ----------------------------------------------------------------------------
# One-time (outside jit) parameter repacking
# ----------------------------------------------------------------------------
def _banded_conv_weight(w_oihw, W, lpad):
    """(Cout,Cin,3,3) -> (3, lpad, Cout*W) banded matrices (one per kh), with
    output columns ordered [ (co, even w) | (co, odd w) ]:
       big[kh][ci*(W+2) + w + kw, col(co, w)] = w_oihw[co, ci, kh, kw]."""
    cout, cin, nkh, nkw = w_oihw.shape
    wpad, wp = W + 2, W // 2
    half = cout * wp
    big = jnp.zeros((nkh, lpad, 2 * half), jnp.float32)
    wi = jnp.arange(W)
    rows = jnp.arange(cin)[:, None] * wpad + wi[None, :]                 # (Cin, W)
    cols = (jnp.arange(cout)[:, None] * wp
            + jnp.where(wi % 2 == 0, 0, half)[None, :]
            + (wi // 2)[None, :])                                        # (Cout, W)
    for kh in range(nkh):
        for kw in range(nkw):
            vals = w_oihw[:, :, kh, kw].T                                # (Cin, Cout)
            big = big.at[kh,
                         (rows + kw)[:, None, :],                        # (Cin, 1, W)
                         cols[None, :, :]                                # (1, Cout, W)
                         ].add(vals[:, :, None])
    return big.astype(jnp.bfloat16)


def prepare_params(params, H, W):
    cin = params["conv1_w"].shape[1]
    c1o = params["conv1_w"].shape[0]
    c2o = params["conv2_w"].shape[0]
    hp, wp = H // 2, W // 2
    hpp, wpp = hp // 2, wp // 2
    lpad1 = _round_up(cin * (W + 2), 128)        # lane-dense padded input widths
    lpad2 = _round_up(c1o * (wp + 2), 128)
    # fc1 columns permuted from PyTorch's (c,h,w) flatten order to our (h,c,w)
    # order, so the conv output flattens into fc1 with a free reshape.
    w1 = params["fc1_w"].reshape(-1, c2o, hpp, wpp)
    w1p = jnp.transpose(w1, (0, 2, 1, 3)).reshape(w1.shape[0], -1)
    nc = params["fc2_w"].shape[0]
    ncp = _round_up(nc, 128)                     # pad fc2 output lanes to 128
    w2p = jnp.pad(params["fc2_w"].T, ((0, 0), (0, ncp - nc)))
    b2p = jnp.pad(params["fc2_b"], (0, ncp - nc))
    return {
        "conv1_bigw": _banded_conv_weight(params["conv1_w"], W, lpad1),
        "conv1_bias": jnp.repeat(params["conv1_b"], wp).reshape(1, -1).astype(jnp.float32),
        "conv2_bigw": _banded_conv_weight(params["conv2_w"], wp, lpad2),
        "conv2_bias": jnp.repeat(params["conv2_b"], wpp).reshape(1, -1).astype(jnp.float32),
        "fc1_w": w1p.T.astype(jnp.bfloat16),     # pre-cast bf16: no per-call cast
        "fc1_b": params["fc1_b"].reshape(1, -1).astype(jnp.float32),
        "fc2_w": w2p.astype(jnp.bfloat16),
        "fc2_b": b2p.reshape(1, -1).astype(jnp.float32),
    }


# ----------------------------------------------------------------------------
# Forward pass (jitted); only cheap bf16 pad / reshape glue outside the kernels
# ----------------------------------------------------------------------------
def _pad_deinterleave(t_nhcw, lpad):
    """(N,H,C,W) -> (N, H+2, lpad) : zero-pad h/w by 1, flatten lanes to
    c*(W+2)+w (zero-padded to lpad), deinterleave rows (even padded rows first)."""
    N, H, C, W = t_nhcw.shape
    t = jnp.pad(t_nhcw, ((0, 0), (1, 1), (0, 0), (1, 1)))
    t = t.reshape(N, H + 2, C * (W + 2))
    t = jnp.concatenate([t[:, 0::2, :], t[:, 1::2, :]], axis=1)
    if lpad > C * (W + 2):
        t = jnp.pad(t, ((0, 0), (0, 0), (0, lpad - C * (W + 2))))
    return t


def simple_cnn_forward(x_nchw, p, *, num_classes):
    N, cin, H, W = x_nchw.shape
    hp, wp = H // 2, W // 2
    hpp = hp // 2

    # conv1 + relu + pool  (input cast to bf16 once; activations stay bf16)
    t = jnp.transpose(x_nchw, (0, 2, 1, 3)).astype(jnp.bfloat16)     # (N,H,C,W)
    xd1 = _pad_deinterleave(t, p["conv1_bigw"].shape[1])
    half1 = p["conv1_bigw"].shape[2] // 2
    y1 = conv_relu_pool(xd1, p["conv1_bigw"], p["conv1_bias"], hp=hp, half=half1)

    # conv2 + relu + pool
    c1o = half1 // wp
    xd2 = _pad_deinterleave(y1.reshape(N, hp, c1o, wp), p["conv2_bigw"].shape[1])
    half2 = p["conv2_bigw"].shape[2] // 2
    y2 = conv_relu_pool(xd2, p["conv2_bigw"], p["conv2_bias"], hp=hpp, half=half2)

    # fc1 + relu + fc2 fused; padded 128-lane output sliced back to num_classes
    feats = y2.reshape(N, -1)              # (h, c, w) order == permuted fc1_w
    logits = mlp_head(feats, p["fc1_w"], p["fc1_b"], p["fc2_w"], p["fc2_b"])
    return logits[:, :num_classes]


# ----------------------------------------------------------------------------
# Pure-XLA f32 reference (PyTorch semantics) for the numerical check
# ----------------------------------------------------------------------------
def reference_forward(x, params):
    dn = ("NCHW", "OIHW", "NCHW")
    y = lax.conv_general_dilated(x, params["conv1_w"], (1, 1),
                                 ((1, 1), (1, 1)), dimension_numbers=dn)
    y = jnp.maximum(y + params["conv1_b"][None, :, None, None], 0.0)
    y = lax.reduce_window(y, -jnp.inf, lax.max, (1, 1, 2, 2), (1, 1, 2, 2), "VALID")
    y = lax.conv_general_dilated(y, params["conv2_w"], (1, 1),
                                 ((1, 1), (1, 1)), dimension_numbers=dn)
    y = jnp.maximum(y + params["conv2_b"][None, :, None, None], 0.0)
    y = lax.reduce_window(y, -jnp.inf, lax.max, (1, 1, 2, 2), (1, 1, 2, 2), "VALID")
    y = y.reshape(y.shape[0], -1)
    y = jnp.maximum(y @ params["fc1_w"].T + params["fc1_b"], 0.0)
    return y @ params["fc2_w"].T + params["fc2_b"]


# ----------------------------------------------------------------------------
# Main
# ----------------------------------------------------------------------------
if __name__ == "__main__":
    key = jax.random.PRNGKey(0)
    N, cin, H, W = 2, 3, 16, 16
    num_classes = 5
    flat_dim = 32 * (H // 4) * (W // 4)        # scaled analogue of 32*150*150

    ks = jax.random.split(key, 9)
    params = {
        "conv1_w": 0.10 * jax.random.normal(ks[0], (16, 3, 3, 3), jnp.float32),
        "conv1_b": 0.10 * jax.random.normal(ks[1], (16,), jnp.float32),
        "conv2_w": 0.10 * jax.random.normal(ks[2], (32, 16, 3, 3), jnp.float32),
        "conv2_b": 0.10 * jax.random.normal(ks[3], (32,), jnp.float32),
        "fc1_w": 0.05 * jax.random.normal(ks[4], (128, flat_dim), jnp.float32),
        "fc1_b": 0.05 * jax.random.normal(ks[5], (128,), jnp.float32),
        "fc2_w": 0.05 * jax.random.normal(ks[6], (num_classes, 128), jnp.float32),
        "fc2_b": 0.05 * jax.random.normal(ks[7], (num_classes,), jnp.float32),
    }
    x = jax.random.normal(ks[8], (N, cin, H, W), jnp.float32)

    prepped = prepare_params(params, H, W)     # one-time weight repack (not jitted)
    fwd = jax.jit(simple_cnn_forward, static_argnames=("num_classes",))
    out = fwd(x, prepped, num_classes=num_classes)
    jax.block_until_ready(out)

    assert out.shape == (N, num_classes), out.shape
    assert bool(jnp.all(jnp.isfinite(out)))
    ref = reference_forward(x, params)         # f32 reference; kernels use bf16 MXU
    max_err = float(jnp.max(jnp.abs(out - ref)))
    assert bool(jnp.allclose(out, ref, rtol=1.5e-1, atol=1e-1)), (
        f"mismatch vs reference: max abs err = {max_err}")
    print("KERNEL_OK")
</pallas_src>

<mosaic_0001>
module attributes {stable_mosaic.version = 11 : i64} {
  func.func @_conv_relu_pool_kernel(%arg0: i32, %arg1: memref<1x18x128xbf16, #tpu.memory_space<vmem>>, %arg2: memref<3x128x256xbf16, #tpu.memory_space<vmem>>, %arg3: memref<1x128xf32, #tpu.memory_space<vmem>>, %arg4: memref<1x8x128xbf16, #tpu.memory_space<vmem>>) attributes {dimension_semantics = [#tpu.dimension_semantics<parallel>], iteration_bounds = array<i64: 2>, scalar_prefetch = 0 : i64, scratch_operands = 0 : i64, tpu.core_type = #tpu.core_type<tc>, window_params = [{transform_indices = @transform_0, window_bounds = array<i64: 1, 18, 128>}, {pipeline_mode = #tpu.pipeline_mode<synchronous>, transform_indices = @transform_1, window_bounds = array<i64: 3, 128, 256>}, {pipeline_mode = #tpu.pipeline_mode<synchronous>, transform_indices = @transform_2, window_bounds = array<i64: 1, 128>}, {transform_indices = @transform_3, window_bounds = array<i64: 1, 8, 128>}]} {
    %c0 = arith.constant 0 : index
    %c0_0 = arith.constant 0 : index
    %c0_1 = arith.constant 0 : index
    %0 = vector.load %arg1[%c0, %c0_0, %c0_1] : memref<1x18x128xbf16, #tpu.memory_space<vmem>>, vector<1x8x128xbf16>
    %1 = vector.shape_cast %0 : vector<1x8x128xbf16> to vector<8x128xbf16>
    %c0_2 = arith.constant 0 : index
    %c1 = arith.constant 1 : index
    %c0_3 = arith.constant 0 : index
    %2 = vector.load %arg1[%c0_2, %c1, %c0_3] : memref<1x18x128xbf16, #tpu.memory_space<vmem>>, vector<1x8x128xbf16>
    %3 = vector.shape_cast %2 : vector<1x8x128xbf16> to vector<8x128xbf16>
    %c0_4 = arith.constant 0 : index
    %c9 = arith.constant 9 : index
    %c0_5 = arith.constant 0 : index
    %4 = vector.load %arg1[%c0_4, %c9, %c0_5] : memref<1x18x128xbf16, #tpu.memory_space<vmem>>, vector<1x8x128xbf16>
    %5 = vector.shape_cast %4 : vector<1x8x128xbf16> to vector<8x128xbf16>
    %c0_6 = arith.constant 0 : index
    %c10 = arith.constant 10 : index
    %c0_7 = arith.constant 0 : index
    %6 = vector.load %arg1[%c0_6, %c10, %c0_7] : memref<1x18x128xbf16, #tpu.memory_space<vmem>>, vector<1x8x128xbf16>
    %7 = vector.shape_cast %6 : vector<1x8x128xbf16> to vector<8x128xbf16>
    %c0_8 = arith.constant 0 : index
    %c0_9 = arith.constant 0 : index
    %c0_10 = arith.constant 0 : index
    %8 = vector.load %arg2[%c0_8, %c0_9, %c0_10] : memref<3x128x256xbf16, #tpu.memory_space<vmem>>, vector<1x128x256xbf16>
    %9 = vector.shape_cast %8 : vector<1x128x256xbf16> to vector<128x256xbf16>
    %c1_11 = arith.constant 1 : index
    %c0_12 = arith.constant 0 : index
    %c0_13 = arith.constant 0 : index
    %10 = vector.load %arg2[%c1_11, %c0_12, %c0_13] : memref<3x128x256xbf16, #tpu.memory_space<vmem>>, vector<1x128x256xbf16>
    %11 = vector.shape_cast %10 : vector<1x128x256xbf16> to vector<128x256xbf16>
    %c2 = arith.constant 2 : index
    %c0_14 = arith.constant 0 : index
    %c0_15 = arith.constant 0 : index
    %12 = vector.load %arg2[%c2, %c0_14, %c0_15] : memref<3x128x256xbf16, #tpu.memory_space<vmem>>, vector<1x128x256xbf16>
    %13 = vector.shape_cast %12 : vector<1x128x256xbf16> to vector<128x256xbf16>
    %cst = arith.constant dense<0.000000e+00> : vector<8x256xf32>
    %14 = tpu.matmul %1, %9, %cst {dimension_numbers = #tpu.dot_dimension_numbers<[1], [0], [0], [1], [0, 0, 1, 1], [], []>} : vector<8x128xbf16>, vector<128x256xbf16>, vector<8x256xf32> -> vector<8x256xf32>
    %cst_16 = arith.constant dense<0.000000e+00> : vector<8x256xf32>
    %15 = tpu.matmul %5, %11, %cst_16 {dimension_numbers = #tpu.dot_dimension_numbers<[1], [0], [0], [1], [0, 0, 1, 1], [], []>} : vector<8x128xbf16>, vector<128x256xbf16>, vector<8x256xf32> -> vector<8x256xf32>
    %16 = arith.addf %14, %15 : vector<8x256xf32>
    %cst_17 = arith.constant dense<0.000000e+00> : vector<8x256xf32>
    %17 = tpu.matmul %3, %13, %cst_17 {dimension_numbers = #tpu.dot_dimension_numbers<[1], [0], [0], [1], [0, 0, 1, 1], [], []>} : vector<8x128xbf16>, vector<128x256xbf16>, vector<8x256xf32> -> vector<8x256xf32>
    %18 = arith.addf %16, %17 : vector<8x256xf32>
    %cst_18 = arith.constant dense<0.000000e+00> : vector<8x256xf32>
    %19 = tpu.matmul %5, %9, %cst_18 {dimension_numbers = #tpu.dot_dimension_numbers<[1], [0], [0], [1], [0, 0, 1, 1], [], []>} : vector<8x128xbf16>, vector<128x256xbf16>, vector<8x256xf32> -> vector<8x256xf32>
    %cst_19 = arith.constant dense<0.000000e+00> : vector<8x256xf32>
    %20 = tpu.matmul %3, %11, %cst_19 {dimension_numbers = #tpu.dot_dimension_numbers<[1], [0], [0], [1], [0, 0, 1, 1], [], []>} : vector<8x128xbf16>, vector<128x256xbf16>, vector<8x256xf32> -> vector<8x256xf32>
    %21 = arith.addf %19, %20 : vector<8x256xf32>
    %cst_20 = arith.constant dense<0.000000e+00> : vector<8x256xf32>
    %22 = tpu.matmul %7, %13, %cst_20 {dimension_numbers = #tpu.dot_dimension_numbers<[1], [0], [0], [1], [0, 0, 1, 1], [], []>} : vector<8x128xbf16>, vector<128x256xbf16>, vector<8x256xf32> -> vector<8x256xf32>
    %23 = arith.addf %21, %22 : vector<8x256xf32>
    %24 = arith.maximumf %18, %23 : vector<8x256xf32>
    %25 = vector.extract_strided_slice %24 {offsets = [0, 0], sizes = [8, 128], strides = [1, 1]} : vector<8x256xf32> to vector<8x128xf32>
    %26 = vector.extract_strided_slice %24 {offsets = [0, 128], sizes = [8, 128], strides = [1, 1]} : vector<8x256xf32> to vector<8x128xf32>
    %27 = arith.maximumf %25, %26 : vector<8x128xf32>
    %c0_21 = arith.constant 0 : index
    %c0_22 = arith.constant 0 : index
    %28 = vector.load %arg3[%c0_21, %c0_22] : memref<1x128xf32, #tpu.memory_space<vmem>>, vector<1x128xf32>
    %29 = vector.broadcast %28 : vector<1x128xf32> to vector<8x128xf32>
    %30 = arith.addf %27, %29 : vector<8x128xf32>
    %cst_23 = arith.constant 0.000000e+00 : f32
    %31 = vector.broadcast %cst_23 : f32 to vector<8x128xf32>
    %32 = arith.maximumf %30, %31 : vector<8x128xf32>
    %33 = arith.truncf %32 : vector<8x128xf32> to vector<8x128xbf16>
    %c0_24 = arith.constant 0 : index
    %c0_25 = arith.constant 0 : index
    %c0_26 = arith.constant 0 : index
    %34 = vector.load %arg4[%c0_24, %c0_25, %c0_26] : memref<1x8x128xbf16, #tpu.memory_space<vmem>>, vector<1x8x128xbf16>
    %35 = vector.shape_cast %34 : vector<1x8x128xbf16> to vector<8x128xbf16>
    %36 = vector.shape_cast %33 : vector<8x128xbf16> to vector<1x8x128xbf16>
    tpu.vector_store %arg4[%c0_24, %c0_25, %c0_26], %36 {strides = array<i32>} : memref<1x8x128xbf16, #tpu.memory_space<vmem>>, vector<1x8x128xbf16>,
    return
  }
  func.func @transform_0(%arg0: i32) -> (i32, i32, i32) {
    %c0_i32 = arith.constant 0 : i32
    %c0_i32_0 = arith.constant 0 : i32
    %c0_i32_1 = arith.constant 0 : i32
    return %arg0, %c0_i32, %c0_i32_0 : i32, i32, i32
  }
  func.func @transform_1(%arg0: i32) -> (i32, i32, i32) {
    %c0_i32 = arith.constant 0 : i32
    %c0_i32_0 = arith.constant 0 : i32
    %c0_i32_1 = arith.constant 0 : i32
    %c0_i32_2 = arith.constant 0 : i32
    return %c0_i32, %c0_i32_0, %c0_i32_1 : i32, i32, i32
  }
  func.func @transform_2(%arg0: i32) -> (i32, i32) {
    %c0_i32 = arith.constant 0 : i32
    %c0_i32_0 = arith.constant 0 : i32
    %c0_i32_1 = arith.constant 0 : i32
    return %c0_i32, %c0_i32_0 : i32, i32
  }
  func.func @transform_3(%arg0: i32) -> (i32, i32, i32) {
    %c0_i32 = arith.constant 0 : i32
    %c0_i32_0 = arith.constant 0 : i32
    %c0_i32_1 = arith.constant 0 : i32
    return %arg0, %c0_i32, %c0_i32_0 : i32, i32, i32
  }
}

module attributes {stable_mosaic.version = 11 : i64} {
  func.func @_mlp_head_kernel(%arg0: i32, %arg1: i32, %arg2: memref<2x512xbf16, #tpu.memory_space<vmem>>, %arg3: memref<512x128xbf16, #tpu.memory_space<vmem>>, %arg4: memref<1x128xf32, #tpu.memory_space<vmem>>, %arg5: memref<128x128xbf16, #tpu.memory_space<vmem>>, %arg6: memref<1x128xf32, #tpu.memory_space<vmem>>, %arg7: memref<2x128xf32, #tpu.memory_space<vmem>>, %arg8: memref<2x128xf32, #tpu.memory_space<vmem>>) attributes {dimension_semantics = [#tpu.dimension_semantics<parallel>, #tpu.dimension_semantics<arbitrary>], iteration_bounds = array<i64: 1, 1>, scalar_prefetch = 0 : i64, scratch_operands = 1 : i64, tpu.core_type = #tpu.core_type<tc>, window_params = [{transform_indices = @transform_0, window_bounds = array<i64: 2, 512>}, {transform_indices = @transform_1, window_bounds = array<i64: 512, 128>}, {pipeline_mode = #tpu.pipeline_mode<synchronous>, transform_indices = @transform_2, window_bounds = array<i64: 1, 128>}, {pipeline_mode = #tpu.pipeline_mode<synchronous>, transform_indices = @transform_3, window_bounds = array<i64: 128, 128>}, {pipeline_mode = #tpu.pipeline_mode<synchronous>, transform_indices = @transform_4, window_bounds = array<i64: 1, 128>}, {transform_indices = @transform_5, window_bounds = array<i64: 2, 128>}]} {
    %c0_i32 = arith.constant 0 : i32
    %0 = arith.cmpi eq, %arg1, %c0_i32 : i32
    %1 = arith.extui %0 : i1 to i32
    %c0_i32_0 = arith.constant 0 : i32
    %2 = arith.cmpi ne, %1, %c0_i32_0 : i32
    scf.if %2 {
      %cst_10 = arith.constant 0.000000e+00 : f32
      %12 = vector.broadcast %cst_10 : f32 to vector<2x128xf32>
      %c0_11 = arith.constant 0 : index
      %c0_12 = arith.constant 0 : index
      %13 = vector.load %arg8[%c0_11, %c0_12] : memref<2x128xf32, #tpu.memory_space<vmem>>, vector<2x128xf32>
      tpu.vector_store %arg8[%c0_11, %c0_12], %12 {strides = array<i32>} : memref<2x128xf32, #tpu.memory_space<vmem>>, vector<2x128xf32>,
    } else {
    }
    %c0 = arith.constant 0 : index
    %c0_1 = arith.constant 0 : index
    %3 = vector.load %arg8[%c0, %c0_1] : memref<2x128xf32, #tpu.memory_space<vmem>>, vector<2x128xf32>
    %c0_2 = arith.constant 0 : index
    %c0_3 = arith.constant 0 : index
    %4 = vector.load %arg2[%c0_2, %c0_3] : memref<2x512xbf16, #tpu.memory_space<vmem>>, vector<2x512xbf16>
    %c0_4 = arith.constant 0 : index
    %c0_5 = arith.constant 0 : index
    %5 = vector.load %arg3[%c0_4, %c0_5] : memref<512x128xbf16, #tpu.memory_space<vmem>>, vector<512x128xbf16>
    %cst = arith.constant dense<0.000000e+00> : vector<2x128xf32>
    %6 = tpu.matmul %4, %5, %cst {dimension_numbers = #tpu.dot_dimension_numbers<[1], [0], [0], [1], [0, 0, 1, 1], [], []>} : vector<2x512xbf16>, vector<512x128xbf16>, vector<2x128xf32> -> vector<2x128xf32>
    %7 = arith.addf %3, %6 : vector<2x128xf32>
    %c0_6 = arith.constant 0 : index
    %c0_7 = arith.constant 0 : index
    %8 = vector.load %arg8[%c0_6, %c0_7] : memref<2x128xf32, #tpu.memory_space<vmem>>, vector<2x128xf32>
    tpu.vector_store %arg8[%c0_6, %c0_7], %7 {strides = array<i32>} : memref<2x128xf32, #tpu.memory_space<vmem>>, vector<2x128xf32>,
    %c0_i32_8 = arith.constant 0 : i32
    %9 = arith.cmpi eq, %arg1, %c0_i32_8 : i32
    %10 = arith.extui %9 : i1 to i32
    %c0_i32_9 = arith.constant 0 : i32
    %11 = arith.cmpi ne, %10, %c0_i32_9 : i32
    scf.if %11 {
      %c0_10 = arith.constant 0 : index
      %c0_11 = arith.constant 0 : index
      %12 = vector.load %arg8[%c0_10, %c0_11] : memref<2x128xf32, #tpu.memory_space<vmem>>, vector<2x128xf32>
      %c0_12 = arith.constant 0 : index
      %c0_13 = arith.constant 0 : index
      %13 = vector.load %arg4[%c0_12, %c0_13] : memref<1x128xf32, #tpu.memory_space<vmem>>, vector<1x128xf32>
      %14 = vector.broadcast %13 : vector<1x128xf32> to vector<2x128xf32>
      %15 = arith.addf %12, %14 : vector<2x128xf32>
      %cst_14 = arith.constant 0.000000e+00 : f32
      %16 = vector.broadcast %cst_14 : f32 to vector<2x128xf32>
      %17 = arith.maximumf %15, %16 : vector<2x128xf32>
      %18 = arith.truncf %17 : vector<2x128xf32> to vector<2x128xbf16>
      %c0_15 = arith.constant 0 : index
      %c0_16 = arith.constant 0 : index
      %19 = vector.load %arg5[%c0_15, %c0_16] : memref<128x128xbf16, #tpu.memory_space<vmem>>, vector<128x128xbf16>
      %cst_17 = arith.constant dense<0.000000e+00> : vector<2x128xf32>
      %20 = tpu.matmul %18, %19, %cst_17 {dimension_numbers = #tpu.dot_dimension_numbers<[1], [0], [0], [1], [0, 0, 1, 1], [], []>} : vector<2x128xbf16>, vector<128x128xbf16>, vector<2x128xf32> -> vector<2x128xf32>
      %c0_18 = arith.constant 0 : index
      %c0_19 = arith.constant 0 : index
      %21 = vector.load %arg6[%c0_18, %c0_19] : memref<1x128xf32, #tpu.memory_space<vmem>>, vector<1x128xf32>
      %22 = vector.broadcast %21 : vector<1x128xf32> to vector<2x128xf32>
      %23 = arith.addf %20, %22 : vector<2x128xf32>
      %c0_20 = arith.constant 0 : index
      %c0_21 = arith.constant 0 : index
      %24 = vector.load %arg7[%c0_20, %c0_21] : memref<2x128xf32, #tpu.memory_space<vmem>>, vector<2x128xf32>
      tpu.vector_store %arg7[%c0_20, %c0_21], %23 {strides = array<i32>} : memref<2x128xf32, #tpu.memory_space<vmem>>, vector<2x128xf32>,
    } else {
    }
    return
  }
  func.func @transform_0(%arg0: i32, %arg1: i32) -> (i32, i32) {
    %c0_i32 = arith.constant 0 : i32
    return %arg0, %arg1 : i32, i32
  }
  func.func @transform_1(%arg0: i32, %arg1: i32) -> (i32, i32) {
    %c0_i32 = arith.constant 0 : i32
    %c0_i32_0 = arith.constant 0 : i32
    return %arg1, %c0_i32 : i32, i32
  }
  func.func @transform_2(%arg0: i32, %arg1: i32) -> (i32, i32) {
    %c0_i32 = arith.constant 0 : i32
    %c0_i32_0 = arith.constant 0 : i32
    %c0_i32_1 = arith.constant 0 : i32
    return %c0_i32, %c0_i32_0 : i32, i32
  }
  func.func @transform_3(%arg0: i32, %arg1: i32) -> (i32, i32) {
    %c0_i32 = arith.constant 0 : i32
    %c0_i32_0 = arith.constant 0 : i32
    %c0_i32_1 = arith.constant 0 : i32
    return %c0_i32, %c0_i32_0 : i32, i32
  }
  func.func @transform_4(%arg0: i32, %arg1: i32) -> (i32, i32) {
    %c0_i32 = arith.constant 0 : i32
    %c0_i32_0 = arith.constant 0 : i32
    %c0_i32_1 = arith.constant 0 : i32
    return %c0_i32, %c0_i32_0 : i32, i32
  }
  func.func @transform_5(%arg0: i32, %arg1: i32) -> (i32, i32) {
    %c0_i32 = arith.constant 0 : i32
    %c0_i32_0 = arith.constant 0 : i32
    return %arg0, %c0_i32 : i32, i32
  }
}

module attributes {stable_mosaic.version = 11 : i64} {
  func.func @_conv_relu_pool_kernel(%arg0: i32, %arg1: memref<1x10x256xbf16, #tpu.memory_space<vmem>>, %arg2: memref<3x256x256xbf16, #tpu.memory_space<vmem>>, %arg3: memref<1x128xf32, #tpu.memory_space<vmem>>, %arg4: memref<1x4x128xbf16, #tpu.memory_space<vmem>>) attributes {dimension_semantics = [#tpu.dimension_semantics<parallel>], iteration_bounds = array<i64: 2>, scalar_prefetch = 0 : i64, scratch_operands = 0 : i64, tpu.core_type = #tpu.core_type<tc>, window_params = [{transform_indices = @transform_0, window_bounds = array<i64: 1, 10, 256>}, {pipeline_mode = #tpu.pipeline_mode<synchronous>, transform_indices = @transform_1, window_bounds = array<i64: 3, 256, 256>}, {pipeline_mode = #tpu.pipeline_mode<synchronous>, transform_indices = @transform_2, window_bounds = array<i64: 1, 128>}, {transform_indices = @transform_3, window_bounds = array<i64: 1, 4, 128>}]} {
    %c0 = arith.constant 0 : index
    %c0_0 = arith.constant 0 : index
    %c0_1 = arith.constant 0 : index
    %0 = vector.load %arg1[%c0, %c0_0, %c0_1] : memref<1x10x256xbf16, #tpu.memory_space<vmem>>, vector<1x4x256xbf16>
    %1 = vector.shape_cast %0 : vector<1x4x256xbf16> to vector<4x256xbf16>
    %c0_2 = arith.constant 0 : index
    %c1 = arith.constant 1 : index
    %c0_3 = arith.constant 0 : index
    %2 = vector.load %arg1[%c0_2, %c1, %c0_3] : memref<1x10x256xbf16, #tpu.memory_space<vmem>>, vector<1x4x256xbf16>
    %3 = vector.shape_cast %2 : vector<1x4x256xbf16> to vector<4x256xbf16>
    %c0_4 = arith.constant 0 : index
    %c5 = arith.constant 5 : index
    %c0_5 = arith.constant 0 : index
    %4 = vector.load %arg1[%c0_4, %c5, %c0_5] : memref<1x10x256xbf16, #tpu.memory_space<vmem>>, vector<1x4x256xbf16>
    %5 = vector.shape_cast %4 : vector<1x4x256xbf16> to vector<4x256xbf16>
    %c0_6 = arith.constant 0 : index
    %c6 = arith.constant 6 : index
    %c0_7 = arith.constant 0 : index
    %6 = vector.load %arg1[%c0_6, %c6, %c0_7] : memref<1x10x256xbf16, #tpu.memory_space<vmem>>, vector<1x4x256xbf16>
    %7 = vector.shape_cast %6 : vector<1x4x256xbf16> to vector<4x256xbf16>
    %c0_8 = arith.constant 0 : index
    %c0_9 = arith.constant 0 : index
    %c0_10 = arith.constant 0 : index
    %8 = vector.load %arg2[%c0_8, %c0_9, %c0_10] : memref<3x256x256xbf16, #tpu.memory_space<vmem>>, vector<1x256x256xbf16>
    %9 = vector.shape_cast %8 : vector<1x256x256xbf16> to vector<256x256xbf16>
    %c1_11 = arith.constant 1 : index
    %c0_12 = arith.constant 0 : index
    %c0_13 = arith.constant 0 : index
    %10 = vector.load %arg2[%c1_11, %c0_12, %c0_13] : memref<3x256x256xbf16, #tpu.memory_space<vmem>>, vector<1x256x256xbf16>
    %11 = vector.shape_cast %10 : vector<1x256x256xbf16> to vector<256x256xbf16>
    %c2 = arith.constant 2 : index
    %c0_14 = arith.constant 0 : index
    %c0_15 = arith.constant 0 : index
    %12 = vector.load %arg2[%c2, %c0_14, %c0_15] : memref<3x256x256xbf16, #tpu.memory_space<vmem>>, vector<1x256x256xbf16>
    %13 = vector.shape_cast %12 : vector<1x256x256xbf16> to vector<256x256xbf16>
    %cst = arith.constant dense<0.000000e+00> : vector<4x256xf32>
    %14 = tpu.matmul %1, %9, %cst {dimension_numbers = #tpu.dot_dimension_numbers<[1], [0], [0], [1], [0, 0, 1, 1], [], []>} : vector<4x256xbf16>, vector<256x256xbf16>, vector<4x256xf32> -> vector<4x256xf32>
    %cst_16 = arith.constant dense<0.000000e+00> : vector<4x256xf32>
    %15 = tpu.matmul %5, %11, %cst_16 {dimension_numbers = #tpu.dot_dimension_numbers<[1], [0], [0], [1], [0, 0, 1, 1], [], []>} : vector<4x256xbf16>, vector<256x256xbf16>, vector<4x256xf32> -> vector<4x256xf32>
    %16 = arith.addf %14, %15 : vector<4x256xf32>
    %cst_17 = arith.constant dense<0.000000e+00> : vector<4x256xf32>
    %17 = tpu.matmul %3, %13, %cst_17 {dimension_numbers = #tpu.dot_dimension_numbers<[1], [0], [0], [1], [0, 0, 1, 1], [], []>} : vector<4x256xbf16>, vector<256x256xbf16>, vector<4x256xf32> -> vector<4x256xf32>
    %18 = arith.addf %16, %17 : vector<4x256xf32>
    %cst_18 = arith.constant dense<0.000000e+00> : vector<4x256xf32>
    %19 = tpu.matmul %5, %9, %cst_18 {dimension_numbers = #tpu.dot_dimension_numbers<[1], [0], [0], [1], [0, 0, 1, 1], [], []>} : vector<4x256xbf16>, vector<256x256xbf16>, vector<4x256xf32> -> vector<4x256xf32>
    %cst_19 = arith.constant dense<0.000000e+00> : vector<4x256xf32>
    %20 = tpu.matmul %3, %11, %cst_19 {dimension_numbers = #tpu.dot_dimension_numbers<[1], [0], [0], [1], [0, 0, 1, 1], [], []>} : vector<4x256xbf16>, vector<256x256xbf16>, vector<4x256xf32> -> vector<4x256xf32>
    %21 = arith.addf %19, %20 : vector<4x256xf32>
    %cst_20 = arith.constant dense<0.000000e+00> : vector<4x256xf32>
    %22 = tpu.matmul %7, %13, %cst_20 {dimension_numbers = #tpu.dot_dimension_numbers<[1], [0], [0], [1], [0, 0, 1, 1], [], []>} : vector<4x256xbf16>, vector<256x256xbf16>, vector<4x256xf32> -> vector<4x256xf32>
    %23 = arith.addf %21, %22 : vector<4x256xf32>
    %24 = arith.maximumf %18, %23 : vector<4x256xf32>
    %25 = vector.extract_strided_slice %24 {offsets = [0, 0], sizes = [4, 128], strides = [1, 1]} : vector<4x256xf32> to vector<4x128xf32>
    %26 = vector.extract_strided_slice %24 {offsets = [0, 128], sizes = [4, 128], strides = [1, 1]} : vector<4x256xf32> to vector<4x128xf32>
    %27 = arith.maximumf %25, %26 : vector<4x128xf32>
    %c0_21 = arith.constant 0 : index
    %c0_22 = arith.constant 0 : index
    %28 = vector.load %arg3[%c0_21, %c0_22] : memref<1x128xf32, #tpu.memory_space<vmem>>, vector<1x128xf32>
    %29 = vector.broadcast %28 : vector<1x128xf32> to vector<4x128xf32>
    %30 = arith.addf %27, %29 : vector<4x128xf32>
    %cst_23 = arith.constant 0.000000e+00 : f32
    %31 = vector.broadcast %cst_23 : f32 to vector<4x128xf32>
    %32 = arith.maximumf %30, %31 : vector<4x128xf32>
    %33 = arith.truncf %32 : vector<4x128xf32> to vector<4x128xbf16>
    %c0_24 = arith.constant 0 : index
    %c0_25 = arith.constant 0 : index
    %c0_26 = arith.constant 0 : index
    %34 = vector.load %arg4[%c0_24, %c0_25, %c0_26] : memref<1x4x128xbf16, #tpu.memory_space<vmem>>, vector<1x4x128xbf16>
    %35 = vector.shape_cast %34 : vector<1x4x128xbf16> to vector<4x128xbf16>
    %36 = vector.shape_cast %33 : vector<4x128xbf16> to vector<1x4x128xbf16>
    tpu.vector_store %arg4[%c0_24, %c0_25, %c0_26], %36 {strides = array<i32>} : memref<1x4x128xbf16, #tpu.memory_space<vmem>>, vector<1x4x128xbf16>,
    return
  }
  func.func @transform_0(%arg0: i32) -> (i32, i32, i32) {
    %c0_i32 = arith.constant 0 : i32
    %c0_i32_0 = arith.constant 0 : i32
    %c0_i32_1 = arith.constant 0 : i32
    return %arg0, %c0_i32, %c0_i32_0 : i32, i32, i32
  }
  func.func @transform_1(%arg0: i32) -> (i32, i32, i32) {
    %c0_i32 = arith.constant 0 : i32
    %c0_i32_0 = arith.constant 0 : i32
    %c0_i32_1 = arith.constant 0 : i32
    %c0_i32_2 = arith.constant 0 : i32
    return %c0_i32, %c0_i32_0, %c0_i32_1 : i32, i32, i32
  }
  func.func @transform_2(%arg0: i32) -> (i32, i32) {
    %c0_i32 = arith.constant 0 : i32
    %c0_i32_0 = arith.constant 0 : i32
    %c0_i32_1 = arith.constant 0 : i32
    return %c0_i32, %c0_i32_0 : i32, i32
  }
  func.func @transform_3(%arg0: i32) -> (i32, i32, i32) {
    %c0_i32 = arith.constant 0 : i32
    %c0_i32_0 = arith.constant 0 : i32
    %c0_i32_1 = arith.constant 0 : i32
    return %arg0, %c0_i32, %c0_i32_0 : i32, i32, i32
  }
}

</mosaic_0001>

<llo_original>
// kernel: simple_cnn_forward.3
$region0: #{simple_cnn_forward.3}
  #allocation0 [shape = 'u32[]', space=smem, size = 0x4, offset = 0x4, fixed_abs, tag = 'smem constant byte address 0x4 - core index']
  #allocation1 [shape = 'u32[144,128]{1,0:T(1,128)}', space=vmem, size = 0x12000, scoped, tag = 'internal scratch']
  %s0 = inlined_call_operand.vmem [shape: bf16[2,18,128], index: 0, kind: input, shape index: {}]
  %s1 = inlined_call_operand.vmem [shape: bf16[3,128,256], index: 1, kind: input, shape index: {}]
  %s2 = inlined_call_operand.vmem [shape: f32[1,128], index: 2, kind: input, shape index: {}]
  %s3 = inlined_call_operand.vmem [shape: bf16[2,8,128], index: 3, kind: output, shape index: {}]
  %s4 = sld [smem:[#allocation0]]
  $region45: #{simple_cnn_forward.3} parent=0
    _
  %s6 = ssub.s32 1, %s4
  %s7 = scalar_select 0, %s6, %s4
  loop: start=0, step=1, limit=4
  $region2: #{simple_cnn_forward.3} parent=0 // loop_pre_header
    _
  $region3: #{simple_cnn_forward.3} parent=0 // loop_header
    %s9 = sphi 0, %s13
    %p10 = scmp.ge.s32.totalorder %s9, 4
    %s19 = sphi 0, %s21
    %s22 = sphi 0, %s19
    %s23 = sphi 0, %s22
    %s39 = sphi 0, %s23
    %s43 = sphi 0, %s43
    %s45 = sphi 0, %s43
    %s46 = sphi 0, %s45
    %s60 = sphi 0, %s46
    %s64 = sphi 0, %s64
    %s66 = sphi 0, %s64
    %s67 = sphi 0, %s66
    %s81 = sphi 0, %s67
    %s87 = sphi 0, %s89
    %s90 = sphi 0, %s87
    %s91 = sphi 0, %s90
    %s107 = sphi 0, %s91
  $region4: #{simple_cnn_forward.3} parent=0 // loop_header_branch
    %12 = sbr.rel (%p10) target = $region8
  $region5: #{simple_cnn_forward.3} parent=0 // loop_body
    %s14 = ssub.s32 %s9, 1
    %s15 = ssub.s32 %s9, 2
    %s16 = sadd.s32 %s9, 1
    %s17 = ssub.s32 %s9, %s16
    %p18 = scmp.eq.s32.totalorder %s17, 0
    %s20 = sadd.s32 %s19, 1
    %s21 = scalar_select %p18, %s19, %s20
    %p24 = pneg %p18
    %p25 = scmp.eq.s32.totalorder %s9, 1
    %p26 = por %p24, %p25
    %p27 = scmp.ne.s32.totalorder %s19, %s22
    %p28 = scmp.eq.s32.totalorder %s9, 0
    %p29 = por %p27, %p28
    %p30 = scmp.ne.s32.totalorder %s19, %s22
    %p31 = scmp.eq.s32.totalorder %s14, 1
    %p32 = por %p30, %p31
    %p33 = scmp.ne.s32.totalorder %s22, %s23
    %p34 = scmp.eq.s32.totalorder %s14, 0
    %p35 = por %p33, %p34
    %p36 = scmp.ne.s32.totalorder %s22, %s23
    %p37 = scmp.eq.s32.totalorder %s15, 1
    %p38 = por %p36, %p37
    %p40 = scmp.ne.s32.totalorder %s23, %s39
    %p41 = scmp.eq.s32.totalorder %s15, 0
    %p42 = por %p40, %p41
    %s44 = sadd.s32 %s43, 1
    %p47 = scmp.eq.s32.totalorder %s9, 1
    %p48 = scmp.ne.s32.totalorder %s43, %s45
    %p49 = scmp.eq.s32.totalorder %s9, 0
    %p50 = por %p48, %p49
    %p51 = scmp.ne.s32.totalorder %s43, %s45
    %p52 = scmp.eq.s32.totalorder %s14, 1
    %p53 = por %p51, %p52
    %p54 = scmp.ne.s32.totalorder %s45, %s46
    %p55 = scmp.eq.s32.totalorder %s14, 0
    %p56 = por %p54, %p55
    %p57 = scmp.ne.s32.totalorder %s45, %s46
    %p58 = scmp.eq.s32.totalorder %s15, 1
    %p59 = por %p57, %p58
    %p61 = scmp.ne.s32.totalorder %s46, %s60
    %p62 = scmp.eq.s32.totalorder %s15, 0
    %p63 = por %p61, %p62
    %s65 = sadd.s32 %s64, 1
    %p68 = scmp.eq.s32.totalorder %s9, 1
    %p69 = scmp.ne.s32.totalorder %s64, %s66
    %p70 = scmp.eq.s32.totalorder %s9, 0
    %p71 = por %p69, %p70
    %p72 = scmp.ne.s32.totalorder %s64, %s66
    %p73 = scmp.eq.s32.totalorder %s14, 1
    %p74 = por %p72, %p73
    %p75 = scmp.ne.s32.totalorder %s66, %s67
    %p76 = scmp.eq.s32.totalorder %s14, 0
    %p77 = por %p75, %p76
    %p78 = scmp.ne.s32.totalorder %s66, %s67
    %p79 = scmp.eq.s32.totalorder %s15, 1
    %p80 = por %p78, %p79
    %p82 = scmp.ne.s32.totalorder %s67, %s81
    %p83 = scmp.eq.s32.totalorder %s15, 0
    %p84 = por %p82, %p83
    %s85 = ssub.s32 %s9, %s16
    %p86 = scmp.eq.s32.totalorder %s85, 0
    %s88 = sadd.s32 %s87, 1
    %s89 = scalar_select %p86, %s87, %s88
    %p92 = pneg %p86
    %p93 = scmp.eq.s32.totalorder %s9, 1
    %p94 = por %p92, %p93
    %p95 = scmp.ne.s32.totalorder %s87, %s90
    %p96 = scmp.eq.s32.totalorder %s9, 0
    %p97 = por %p95, %p96
    %p98 = scmp.ne.s32.totalorder %s87, %s90
    %p99 = scmp.eq.s32.totalorder %s14, 1
    %p100 = por %p98, %p99
    %p101 = scmp.ne.s32.totalorder %s90, %s91
    %p102 = scmp.eq.s32.totalorder %s14, 0
    %p103 = por %p101, %p102
    %p104 = scmp.ne.s32.totalorder %s90, %s91
    %p105 = scmp.eq.s32.totalorder %s15, 1
    %p106 = por %p104, %p105
    %p108 = scmp.ne.s32.totalorder %s91, %s107
    %p109 = scmp.eq.s32.totalorder %s15, 0
    %p110 = por %p108, %p109
    %p111 = scmp.le.s32.totalorder 1, %s9
    %p112 = scmp.lt.s32.totalorder %s9, 3
    %p113 = pnand %p111, %p112
    %p114 = pneg %p113
    // Predicated region
    $region9: #{simple_cnn_forward.3} parent=5 // pred_check
      _
    $region10: #{simple_cnn_forward.3} parent=5 // pred_check_branch
      %116 = sbr.rel (%p113) target = $region12
    $region11: #{simple_cnn_forward.3} parent=5 // pred_region
      %s117 = ssub.s32 %s9, 1
      // Predicated region
      $region13: #{simple_cnn_forward.3} parent=11 // pred_check
        %p118 = pneg %p56
      $region14: #{simple_cnn_forward.3} parent=11 // pred_check_branch
        %120 = sbr.rel (%p118) target = $region16
      $region15: #{simple_cnn_forward.3} parent=11 // pred_region
        _
      $region16: #{simple_cnn_forward.3} parent=11 // pred_fallthru
        _
      // Predicated region
      $region17: #{simple_cnn_forward.3} parent=11 // pred_check
        %p121 = pneg %p77
      $region18: #{simple_cnn_forward.3} parent=11 // pred_check_branch
        %123 = sbr.rel (%p121) target = $region20
      $region19: #{simple_cnn_forward.3} parent=11 // pred_region
        _
      $region20: #{simple_cnn_forward.3} parent=11 // pred_fallthru
        _
    $region12: #{simple_cnn_forward.3} parent=5 // pred_fallthru
      _
    %p124 = scmp.lt.s32.totalorder %s9, 2
    // Predicated region
    $region21: #{simple_cnn_forward.3} parent=5 // pred_check
      %p125 = pneg %p124
    $region22: #{simple_cnn_forward.3} parent=5 // pred_check_branch
      %127 = sbr.rel (%p125) target = $region24
    $region23: #{simple_cnn_forward.3} parent=5 // pred_region
      // Predicated region
      $region25: #{simple_cnn_forward.3} parent=23 // pred_check
        %p128 = pneg %p29
      $region26: #{simple_cnn_forward.3} parent=23 // pred_check_branch
        %130 = sbr.rel (%p128) target = $region28
      $region27: #{simple_cnn_forward.3} parent=23 // pred_region
        %p131 = scmp.lt.s32.totalorder %s9, 1
        %s132 = scalar_select %p131, %s9, 1
        %s133 = smul.addr %s132, 3
        %s134 = smul.addr %s133, 4
        %s135 = scalar_lea.vmem %s0, %s134
      $region28: #{simple_cnn_forward.3} parent=23 // pred_fallthru
        _
    $region24: #{simple_cnn_forward.3} parent=5 // pred_fallthru
      _
    %p136 = scmp.le.s32.totalorder 1, %s9
    %p137 = scmp.lt.s32.totalorder %s9, 3
    %p138 = pnand %p136, %p137
    %p139 = pneg %p138
    // Predicated region
    $region29: #{simple_cnn_forward.3} parent=5 // pred_check
      _
    $region30: #{simple_cnn_forward.3} parent=5 // pred_check_branch
      %141 = sbr.rel (%p138) target = $region32
    $region31: #{simple_cnn_forward.3} parent=5 // pred_region
      %s142 = ssub.s32 %s9, 1
      %p143 = scmp.lt.s32.totalorder %s14, 1
      %s144 = scalar_select %p143, %s14, 1
      %s145 = smul.addr %s144, 3
      %s146 = smul.addr %s145, 4
      %s147 = scalar_lea.vmem %s0, %s146
      %p148 = pneg %p35
      %p149 = pneg %p32
      %p150 = pneg %p56
      %p151 = pneg %p53
      %p152 = pneg %p77
      %p153 = pneg %p74
      %p154 = pneg %p103
      %p155 = pneg %p100
      %p156 = scmp.lt.s32.totalorder %s14, 1
      %s157 = scalar_select %p156, %s14, 1
      %s158 = smul.addr %s157, 4
      %s159 = scalar_lea.vmem %s3, %s158
      %p160 = scmp.lt.s32.totalorder %s14, 1
      %s161 = scalar_select %p160, %s14, 1
      %s162 = smul.addr %s161, 3
      %s163 = smul.addr %s162, 4
      %s164 = scalar_lea.vmem %s0, %s163
      %p165 = scmp.lt.s32.totalorder %s14, 1
      %s166 = scalar_select %p165, %s14, 1
      %s167 = smul.addr %s166, 4
      %s168 = scalar_lea.vmem %s3, %s167
      %v170 = vld [vmem:[%s164] sm:$0xf]
      %v171 = vld [vmem:[%s164 + $0x4] sm:$0x1]
      %v172 = vld [vmem:[%s164 + $0x4] sm:$0xf]
      %v173 = vld [vmem:[%s164 + $0x8] sm:$0x1]
      %v174 = vld [vmem:[%s164 + $0x4] sm:$0xe]
      %v175 = vld [vmem:[%s1] sm:$0xff]
      %v176 = vld [vmem:[%s1 + $0x8] sm:$0xff]
      %v177 = vld [vmem:[%s1 + $0x10] sm:$0xff]
      %v178 = vld [vmem:[%s1 + $0x18] sm:$0xff]
      %v179 = vld [vmem:[%s1 + $0x20] sm:$0xff]
      %v180 = vld [vmem:[%s1 + $0x28] sm:$0xff]
      %v181 = vld [vmem:[%s1 + $0x30] sm:$0xff]
      %v182 = vld [vmem:[%s1 + $0x38] sm:$0xff]
      %v183 = vld [vmem:[%s1 + $0x40] sm:$0xff]
      %v184 = vld [vmem:[%s1 + $0x48] sm:$0xff]
      %v185 = vld [vmem:[%s1 + $0x50] sm:$0xff]
      %v186 = vld [vmem:[%s1 + $0x58] sm:$0xff]
      %v187 = vld [vmem:[%s1 + $0x60] sm:$0xff]
      %v188 = vld [vmem:[%s1 + $0x68] sm:$0xff]
      %v189 = vld [vmem:[%s1 + $0x70] sm:$0xff]
      %v190 = vld [vmem:[%s1 + $0x78] sm:$0xff]
      %s191 = scalar_lea.vmem %s1, 128
      %v192 = vld [vmem:[%s191] sm:$0xff]
      %v193 = vld [vmem:[%s191 + $0x8] sm:$0xff]
      %v194 = vld [vmem:[%s191 + $0x10] sm:$0xff]
      %v195 = vld [vmem:[%s191 + $0x18] sm:$0xff]
      %v196 = vld [vmem:[%s191 + $0x20] sm:$0xff]
      %v197 = vld [vmem:[%s191 + $0x28] sm:$0xff]
      %v198 = vld [vmem:[%s191 + $0x30] sm:$0xff]
      %v199 = vld [vmem:[%s191 + $0x38] sm:$0xff]
      %v200 = vld [vmem:[%s191 + $0x40] sm:$0xff]
      %v201 = vld [vmem:[%s191 + $0x48] sm:$0xff]
      %v202 = vld [vmem:[%s191 + $0x50] sm:$0xff]
      %v203 = vld [vmem:[%s191 + $0x58] sm:$0xff]
      %v204 = vld [vmem:[%s191 + $0x60] sm:$0xff]
      %v205 = vld [vmem:[%s191 + $0x68] sm:$0xff]
      %v206 = vld [vmem:[%s191 + $0x70] sm:$0xff]
      %v207 = vld [vmem:[%s191 + $0x78] sm:$0xff]
      %s208 = scalar_lea.vmem %s1, 256
      %v209 = vld [vmem:[%s208] sm:$0xff]
      %v210 = vld [vmem:[%s208 + $0x8] sm:$0xff]
      %v211 = vld [vmem:[%s208 + $0x10] sm:$0xff]
      %v212 = vld [vmem:[%s208 + $0x18] sm:$0xff]
      %v213 = vld [vmem:[%s208 + $0x20] sm:$0xff]
      %v214 = vld [vmem:[%s208 + $0x28] sm:$0xff]
      %v215 = vld [vmem:[%s208 + $0x30] sm:$0xff]
      %v216 = vld [vmem:[%s208 + $0x38] sm:$0xff]
      %v217 = vld [vmem:[%s208 + $0x40] sm:$0xff]
      %v218 = vld [vmem:[%s208 + $0x48] sm:$0xff]
      %v219 = vld [vmem:[%s208 + $0x50] sm:$0xff]
      %v220 = vld [vmem:[%s208 + $0x58] sm:$0xff]
      %v221 = vld [vmem:[%s208 + $0x60] sm:$0xff]
      %v222 = vld [vmem:[%s208 + $0x68] sm:$0xff]
      %v223 = vld [vmem:[%s208 + $0x70] sm:$0xff]
      %v224 = vld [vmem:[%s208 + $0x78] sm:$0xff]
      %v227 = vunpack.c.l.b16 %v172
      %v228 = vunpack.c.l.b16 %v173
      %v229 = vpack.c.b16 %v228, %v227
      %v231 = vshrl.u32 %v229, 16
      %v233 = vshll.u32 %v229, 16
      %v235 = vrot.slane %v233, 1
      %v236 = vor.u32 %v231, %v235
      %v254 = vunpack.c.l.b16 %v192
      %v255 = vunpack.c.h.b16 %v192
      %v256 = vunpack.c.l.b16 %v193
      %v257 = vunpack.c.h.b16 %v193
      %v258 = vunpack.c.l.b16 %v194
      %v259 = vunpack.c.h.b16 %v194
      %v260 = vunpack.c.l.b16 %v195
      %v261 = vunpack.c.h.b16 %v195
      %v262 = vunpack.c.l.b16 %v196
      %v263 = vunpack.c.h.b16 %v196
      %v264 = vunpack.c.l.b16 %v197
      %v265 = vunpack.c.h.b16 %v197
      %v266 = vunpack.c.l.b16 %v198
      %v267 = vunpack.c.h.b16 %v198
      %v268 = vunpack.c.l.b16 %v199
      %v269 = vunpack.c.h.b16 %v199
      %v270 = vunpack.c.l.b16 %v200
      %v271 = vunpack.c.h.b16 %v200
      %v272 = vunpack.c.l.b16 %v201
      %v273 = vunpack.c.h.b16 %v201
      %v274 = vunpack.c.l.b16 %v202
      %v275 = vunpack.c.h.b16 %v202
      %v276 = vunpack.c.l.b16 %v203
      %v277 = vunpack.c.h.b16 %v203
      %v278 = vunpack.c.l.b16 %v204
      %v279 = vunpack.c.h.b16 %v204
      %v280 = vunpack.c.l.b16 %v205
      %v281 = vunpack.c.h.b16 %v205
      %v282 = vunpack.c.l.b16 %v206
      %v283 = vunpack.c.h.b16 %v206
      %v284 = vunpack.c.l.b16 %v207
      %v285 = vunpack.c.h.b16 %v207
      %v286 = vpack.c.b16 %v256, %v254
      %v287 = vpack.c.b16 %v257, %v255
      %v288 = vpack.c.b16 %v260, %v258
      %v289 = vpack.c.b16 %v261, %v259
      %v290 = vpack.c.b16 %v264, %v262
      %v291 = vpack.c.b16 %v265, %v263
      %v292 = vpack.c.b16 %v268, %v266
      %v293 = vpack.c.b16 %v269, %v267
      %v294 = vpack.c.b16 %v272, %v270
      %v295 = vpack.c.b16 %v273, %v271
      %v296 = vpack.c.b16 %v276, %v274
      %v297 = vpack.c.b16 %v277, %v275
      %v298 = vpack.c.b16 %v280, %v278
      %v299 = vpack.c.b16 %v281, %v279
      %v300 = vpack.c.b16 %v284, %v282
      %v301 = vpack.c.b16 %v285, %v283
      %318 = vmatprep.subr.bf16.mxu0 %v301
      %319 = vmatpush1.bf16.msra.mxu0 %v300
      %320 = vmatprep.subr.bf16.mxu0 %v299
      %321 = vmatpush1.bf16.msra.mxu0 %v298
      %322 = vmatprep.subr.bf16.mxu0 %v297
      %323 = vmatpush1.bf16.msra.mxu0 %v296
      %324 = vmatprep.subr.bf16.mxu0 %v295
      %325 = vmatpush1.bf16.msra.mxu0 %v294
      %326 = vmatprep.subr.bf16.mxu0 %v293
      %327 = vmatpush1.bf16.msra.mxu0 %v292
      %328 = vmatprep.subr.bf16.mxu0 %v291
      %329 = vmatpush1.bf16.msra.mxu0 %v290
      %330 = vmatprep.subr.bf16.mxu0 %v289
      %331 = vmatpush1.bf16.msra.mxu0 %v288
      %332 = vmatprep.subr.bf16.mxu0 %v287
      %333 = vmatpush1.bf16.msra.mxu0 %v286
      %334 = vmatprep.subr.bf16.mxu0 0
      %335 = vmatpush2.bf16.msra.mxu0 0
      %336 = vmatprep.subr.bf16.mxu0 0
      %337 = vmatpush2.bf16.msra.mxu0 0
      %338 = vmatprep.subr.bf16.mxu0 0
      %339 = vmatpush2.bf16.msra.mxu0 0
      %340 = vmatprep.subr.bf16.mxu0 0
      %341 = vmatpush2.bf16.msra.mxu0 0
      %342 = vmatprep.subr.bf16.mxu0 0
      %343 = vmatpush2.bf16.msra.mxu0 0
      %344 = vmatprep.subr.bf16.mxu0 0
      %345 = vmatpush2.bf16.msra.mxu0 0
      %346 = vmatprep.subr.bf16.mxu0 0
      %347 = vmatpush2.bf16.msra.mxu0 0
      %348 = vmatprep.subr.bf16.mxu0 0
      %349 = vmatpush2.bf16.msra.mxu0 0
      %350 = vmatprep.mubr.bf16.mxu0 0
      %351 = vmatmul.mubr.bf16.gmra.mxu0 %v236
      %v352 = vpop.f32.mrf.mxu0
      %v353 = vadd.f32 0.0, %v352
      %v354 = vpop.f32.mrf.mxu0
      %v355 = vadd.f32 0.0, %v354
      %v356 = vpop.f32.mrf.mxu0
      %v357 = vpop.f32.mrf.mxu0
      %358 = vdwg.mxu0
      %v375 = vunpack.c.l.b16 %v175
      %v376 = vunpack.c.h.b16 %v175
      %v377 = vunpack.c.l.b16 %v176
      %v378 = vunpack.c.h.b16 %v176
      %v379 = vunpack.c.l.b16 %v177
      %v380 = vunpack.c.h.b16 %v177
      %v381 = vunpack.c.l.b16 %v178
      %v382 = vunpack.c.h.b16 %v178
      %v383 = vunpack.c.l.b16 %v179
      %v384 = vunpack.c.h.b16 %v179
      %v385 = vunpack.c.l.b16 %v180
      %v386 = vunpack.c.h.b16 %v180
      %v387 = vunpack.c.l.b16 %v181
      %v388 = vunpack.c.h.b16 %v181
      %v389 = vunpack.c.l.b16 %v182
      %v390 = vunpack.c.h.b16 %v182
      %v391 = vunpack.c.l.b16 %v183
      %v392 = vunpack.c.h.b16 %v183
      %v393 = vunpack.c.l.b16 %v184
      %v394 = vunpack.c.h.b16 %v184
      %v395 = vunpack.c.l.b16 %v185
      %v396 = vunpack.c.h.b16 %v185
      %v397 = vunpack.c.l.b16 %v186
      %v398 = vunpack.c.h.b16 %v186
      %v399 = vunpack.c.l.b16 %v187
      %v400 = vunpack.c.h.b16 %v187
      %v401 = vunpack.c.l.b16 %v188
      %v402 = vunpack.c.h.b16 %v188
      %v403 = vunpack.c.l.b16 %v189
      %v404 = vunpack.c.h.b16 %v189
      %v405 = vunpack.c.l.b16 %v190
      %v406 = vunpack.c.h.b16 %v190
      %v407 = vpack.c.b16 %v377, %v375
      %v408 = vpack.c.b16 %v378, %v376
      %v409 = vpack.c.b16 %v381, %v379
      %v410 = vpack.c.b16 %v382, %v380
      %v411 = vpack.c.b16 %v385, %v383
      %v412 = vpack.c.b16 %v386, %v384
      %v413 = vpack.c.b16 %v389, %v387
      %v414 = vpack.c.b16 %v390, %v388
      %v415 = vpack.c.b16 %v393, %v391
      %v416 = vpack.c.b16 %v394, %v392
      %v417 = vpack.c.b16 %v397, %v395
      %v418 = vpack.c.b16 %v398, %v396
      %v419 = vpack.c.b16 %v401, %v399
      %v420 = vpack.c.b16 %v402, %v400
      %v421 = vpack.c.b16 %v405, %v403
      %v422 = vpack.c.b16 %v406, %v404
      %439 = vmatprep.subr.bf16.mxu0 %v422
      %440 = vmatpush1.bf16.msra.mxu0 %v421
      %441 = vmatprep.subr.bf16.mxu0 %v420
      %442 = vmatpush1.bf16.msra.mxu0 %v419
      %443 = vmatprep.subr.bf16.mxu0 %v418
      %444 = vmatpush1.bf16.msra.mxu0 %v417
      %445 = vmatprep.subr.bf16.mxu0 %v416
      %446 = vmatpush1.bf16.msra.mxu0 %v415
      %447 = vmatprep.subr.bf16.mxu0 %v414
      %448 = vmatpush1.bf16.msra.mxu0 %v413
      %449 = vmatprep.subr.bf16.mxu0 %v412
      %450 = vmatpush1.bf16.msra.mxu0 %v411
      %451 = vmatprep.subr.bf16.mxu0 %v410
      %452 = vmatpush1.bf16.msra.mxu0 %v409
      %453 = vmatprep.subr.bf16.mxu0 %v408
      %454 = vmatpush1.bf16.msra.mxu0 %v407
      %455 = vmatprep.subr.bf16.mxu0 0
      %456 = vmatpush2.bf16.msra.mxu0 0
      %457 = vmatprep.subr.bf16.mxu0 0
      %458 = vmatpush2.bf16.msra.mxu0 0
      %459 = vmatprep.subr.bf16.mxu0 0
      %460 = vmatpush2.bf16.msra.mxu0 0
      %461 = vmatprep.subr.bf16.mxu0 0
      %462 = vmatpush2.bf16.msra.mxu0 0
      %463 = vmatprep.subr.bf16.mxu0 0
      %464 = vmatpush2.bf16.msra.mxu0 0
      %465 = vmatprep.subr.bf16.mxu0 0
      %466 = vmatpush2.bf16.msra.mxu0 0
      %467 = vmatprep.subr.bf16.mxu0 0
      %468 = vmatpush2.bf16.msra.mxu0 0
      %469 = vmatprep.subr.bf16.mxu0 0
      %470 = vmatpush2.bf16.msra.mxu0 0
      %471 = vmatprep.mubr.bf16.mxu0 0
      %472 = vmatmul.mubr.bf16.gmra.mxu0 %v170
      %v473 = vpop.f32.mrf.mxu0
      %v474 = vadd.f32 %v353, %v473
      %v475 = vpop.f32.mrf.mxu0
      %v476 = vadd.f32 %v355, %v475
      %v477 = vpop.f32.mrf.mxu0
      %v478 = vpop.f32.mrf.mxu0
      %479 = vdwg.mxu0
      %v482 = vunpack.c.l.b16 %v170
      %v483 = vunpack.c.l.b16 %v171
      %v484 = vpack.c.b16 %v483, %v482
      %v486 = vshrl.u32 %v484, 16
      %v488 = vshll.u32 %v484, 16
      %v490 = vrot.slane %v488, 1
      %v491 = vor.u32 %v486, %v490
      %v509 = vunpack.c.l.b16 %v209
      %v510 = vunpack.c.h.b16 %v209
      %v511 = vunpack.c.l.b16 %v210
      %v512 = vunpack.c.h.b16 %v210
      %v513 = vunpack.c.l.b16 %v211
      %v514 = vunpack.c.h.b16 %v211
      %v515 = vunpack.c.l.b16 %v212
      %v516 = vunpack.c.h.b16 %v212
      %v517 = vunpack.c.l.b16 %v213
      %v518 = vunpack.c.h.b16 %v213
      %v519 = vunpack.c.l.b16 %v214
      %v520 = vunpack.c.h.b16 %v214
      %v521 = vunpack.c.l.b16 %v215
      %v522 = vunpack.c.h.b16 %v215
      %v523 = vunpack.c.l.b16 %v216
      %v524 = vunpack.c.h.b16 %v216
      %v525 = vunpack.c.l.b16 %v217
      %v526 = vunpack.c.h.b16 %v217
      %v527 = vunpack.c.l.b16 %v218
      %v528 = vunpack.c.h.b16 %v218
      %v529 = vunpack.c.l.b16 %v219
      %v530 = vunpack.c.h.b16 %v219
      %v531 = vunpack.c.l.b16 %v220
      %v532 = vunpack.c.h.b16 %v220
      %v533 = vunpack.c.l.b16 %v221
      %v534 = vunpack.c.h.b16 %v221
      %v535 = vunpack.c.l.b16 %v222
      %v536 = vunpack.c.h.b16 %v222
      %v537 = vunpack.c.l.b16 %v223
      %v538 = vunpack.c.h.b16 %v223
      %v539 = vunpack.c.l.b16 %v224
      %v540 = vunpack.c.h.b16 %v224
      %v541 = vpack.c.b16 %v511, %v509
      %v542 = vpack.c.b16 %v512, %v510
      %v543 = vpack.c.b16 %v515, %v513
      %v544 = vpack.c.b16 %v516, %v514
      %v545 = vpack.c.b16 %v519, %v517
      %v546 = vpack.c.b16 %v520, %v518
      %v547 = vpack.c.b16 %v523, %v521
      %v548 = vpack.c.b16 %v524, %v522
      %v549 = vpack.c.b16 %v527, %v525
      %v550 = vpack.c.b16 %v528, %v526
      %v551 = vpack.c.b16 %v531, %v529
      %v552 = vpack.c.b16 %v532, %v530
      %v553 = vpack.c.b16 %v535, %v533
      %v554 = vpack.c.b16 %v536, %v534
      %v555 = vpack.c.b16 %v539, %v537
      %v556 = vpack.c.b16 %v540, %v538
      %573 = vmatprep.subr.bf16.mxu0 %v556
      %574 = vmatpush1.bf16.msra.mxu0 %v555
      %575 = vmatprep.subr.bf16.mxu0 %v554
      %576 = vmatpush1.bf16.msra.mxu0 %v553
      %577 = vmatprep.subr.bf16.mxu0 %v552
      %578 = vmatpush1.bf16.msra.mxu0 %v551
      %579 = vmatprep.subr.bf16.mxu0 %v550
      %580 = vmatpush1.bf16.msra.mxu0 %v549
      %581 = vmatprep.subr.bf16.mxu0 %v548
      %582 = vmatpush1.bf16.msra.mxu0 %v547
      %583 = vmatprep.subr.bf16.mxu0 %v546
      %584 = vmatpush1.bf16.msra.mxu0 %v545
      %585 = vmatprep.subr.bf16.mxu0 %v544
      %586 = vmatpush1.bf16.msra.mxu0 %v543
      %587 = vmatprep.subr.bf16.mxu0 %v542
      %588 = vmatpush1.bf16.msra.mxu0 %v541
      %589 = vmatprep.subr.bf16.mxu0 0
      %590 = vmatpush2.bf16.msra.mxu0 0
      %591 = vmatprep.subr.bf16.mxu0 0
      %592 = vmatpush2.bf16.msra.mxu0 0
      %593 = vmatprep.subr.bf16.mxu0 0
      %594 = vmatpush2.bf16.msra.mxu0 0
      %595 = vmatprep.subr.bf16.mxu0 0
      %596 = vmatpush2.bf16.msra.mxu0 0
      %597 = vmatprep.subr.bf16.mxu0 0
      %598 = vmatpush2.bf16.msra.mxu0 0
      %599 = vmatprep.subr.bf16.mxu0 0
      %600 = vmatpush2.bf16.msra.mxu0 0
      %601 = vmatprep.subr.bf16.mxu0 0
      %602 = vmatpush2.bf16.msra.mxu0 0
      %603 = vmatprep.subr.bf16.mxu0 0
      %604 = vmatpush2.bf16.msra.mxu0 0
      %605 = vmatprep.mubr.bf16.mxu0 0
      %606 = vmatmul.mubr.bf16.gmra.mxu0 %v491
      %v607 = vpop.f32.mrf.mxu0
      %v608 = vadd.f32 0.0, %v607
      %v609 = vpop.f32.mrf.mxu0
      %v610 = vadd.f32 0.0, %v609
      %v611 = vpop.f32.mrf.mxu0
      %v612 = vpop.f32.mrf.mxu0
      %613 = vdwg.mxu0
      %v614 = vadd.f32 %v474, %v608
      %v615 = vadd.f32 %v476, %v610
      %616 = vmatprep.subr.bf16.mxu0 %v301
      %617 = vmatpush1.bf16.msra.mxu0 %v300
      %618 = vmatprep.subr.bf16.mxu0 %v299
      %619 = vmatpush1.bf16.msra.mxu0 %v298
      %620 = vmatprep.subr.bf16.mxu0 %v297
      %621 = vmatpush1.bf16.msra.mxu0 %v296
      %622 = vmatprep.subr.bf16.mxu0 %v295
      %623 = vmatpush1.bf16.msra.mxu0 %v294
      %624 = vmatprep.subr.bf16.mxu0 %v293
      %625 = vmatpush1.bf16.msra.mxu0 %v292
      %626 = vmatprep.subr.bf16.mxu0 %v291
      %627 = vmatpush1.bf16.msra.mxu0 %v290
      %628 = vmatprep.subr.bf16.mxu0 %v289
      %629 = vmatpush1.bf16.msra.mxu0 %v288
      %630 = vmatprep.subr.bf16.mxu0 %v287
      %631 = vmatpush1.bf16.msra.mxu0 %v286
      %632 = vmatprep.subr.bf16.mxu0 0
      %633 = vmatpush2.bf16.msra.mxu0 0
      %634 = vmatprep.subr.bf16.mxu0 0
      %635 = vmatpush2.bf16.msra.mxu0 0
      %636 = vmatprep.subr.bf16.mxu0 0
      %637 = vmatpush2.bf16.msra.mxu0 0
      %638 = vmatprep.subr.bf16.mxu0 0
      %639 = vmatpush2.bf16.msra.mxu0 0
      %640 = vmatprep.subr.bf16.mxu0 0
      %641 = vmatpush2.bf16.msra.mxu0 0
      %642 = vmatprep.subr.bf16.mxu0 0
      %643 = vmatpush2.bf16.msra.mxu0 0
      %644 = vmatprep.subr.bf16.mxu0 0
      %645 = vmatpush2.bf16.msra.mxu0 0
      %646 = vmatprep.subr.bf16.mxu0 0
      %647 = vmatpush2.bf16.msra.mxu0 0
      %648 = vmatprep.mubr.bf16.mxu0 0
      %649 = vmatmul.mubr.bf16.gmra.mxu0 %v491
      %v650 = vpop.f32.mrf.mxu0
      %v651 = vadd.f32 0.0, %v650
      %v652 = vpop.f32.mrf.mxu0
      %v653 = vadd.f32 0.0, %v652
      %v654 = vpop.f32.mrf.mxu0
      %v655 = vpop.f32.mrf.mxu0
      %656 = vdwg.mxu0
      %657 = vmatprep.subr.bf16.mxu0 %v422
      %658 = vmatpush1.bf16.msra.mxu0 %v421
      %659 = vmatprep.subr.bf16.mxu0 %v420
      %660 = vmatpush1.bf16.msra.mxu0 %v419
      %661 = vmatprep.subr.bf16.mxu0 %v418
      %662 = vmatpush1.bf16.msra.mxu0 %v417
      %663 = vmatprep.subr.bf16.mxu0 %v416
      %664 = vmatpush1.bf16.msra.mxu0 %v415
      %665 = vmatprep.subr.bf16.mxu0 %v414
      %666 = vmatpush1.bf16.msra.mxu0 %v413
      %667 = vmatprep.subr.bf16.mxu0 %v412
      %668 = vmatpush1.bf16.msra.mxu0 %v411
      %669 = vmatprep.subr.bf16.mxu0 %v410
      %670 = vmatpush1.bf16.msra.mxu0 %v409
      %671 = vmatprep.subr.bf16.mxu0 %v408
      %672 = vmatpush1.bf16.msra.mxu0 %v407
      %673 = vmatprep.subr.bf16.mxu0 0
      %674 = vmatpush2.bf16.msra.mxu0 0
      %675 = vmatprep.subr.bf16.mxu0 0
      %676 = vmatpush2.bf16.msra.mxu0 0
      %677 = vmatprep.subr.bf16.mxu0 0
      %678 = vmatpush2.bf16.msra.mxu0 0
      %679 = vmatprep.subr.bf16.mxu0 0
      %680 = vmatpush2.bf16.msra.mxu0 0
      %681 = vmatprep.subr.bf16.mxu0 0
      %682 = vmatpush2.bf16.msra.mxu0 0
      %683 = vmatprep.subr.bf16.mxu0 0
      %684 = vmatpush2.bf16.msra.mxu0 0
      %685 = vmatprep.subr.bf16.mxu0 0
      %686 = vmatpush2.bf16.msra.mxu0 0
      %687 = vmatprep.subr.bf16.mxu0 0
      %688 = vmatpush2.bf16.msra.mxu0 0
      %689 = vmatprep.mubr.bf16.mxu0 0
      %690 = vmatmul.mubr.bf16.gmra.mxu0 %v236
      %v691 = vpop.f32.mrf.mxu0
      %v692 = vadd.f32 %v651, %v691
      %v693 = vpop.f32.mrf.mxu0
      %v694 = vadd.f32 %v653, %v693
      %v695 = vpop.f32.mrf.mxu0
      %v696 = vpop.f32.mrf.mxu0
      %697 = vdwg.mxu0
      %v699 = vunpack.c.l.b16 %v174
      %v700 = vpack.c.b16 %v228, %v699
      %v701 = vrot.slane %v700, 1
      %703 = vmatprep.subr.bf16.mxu0 %v556
      %704 = vmatpush1.bf16.msra.mxu0 %v555
      %705 = vmatprep.subr.bf16.mxu0 %v554
      %706 = vmatpush1.bf16.msra.mxu0 %v553
      %707 = vmatprep.subr.bf16.mxu0 %v552
      %708 = vmatpush1.bf16.msra.mxu0 %v551
      %709 = vmatprep.subr.bf16.mxu0 %v550
      %710 = vmatpush1.bf16.msra.mxu0 %v549
      %711 = vmatprep.subr.bf16.mxu0 %v548
      %712 = vmatpush1.bf16.msra.mxu0 %v547
      %713 = vmatprep.subr.bf16.mxu0 %v546
      %714 = vmatpush1.bf16.msra.mxu0 %v545
      %715 = vmatprep.subr.bf16.mxu0 %v544
      %716 = vmatpush1.bf16.msra.mxu0 %v543
      %717 = vmatprep.subr.bf16.mxu0 %v542
      %718 = vmatpush1.bf16.msra.mxu0 %v541
      %719 = vmatprep.subr.bf16.mxu0 0
      %720 = vmatpush2.bf16.msra.mxu0 0
      %721 = vmatprep.subr.bf16.mxu0 0
      %722 = vmatpush2.bf16.msra.mxu0 0
      %723 = vmatprep.subr.bf16.mxu0 0
      %724 = vmatpush2.bf16.msra.mxu0 0
      %725 = vmatprep.subr.bf16.mxu0 0
      %726 = vmatpush2.bf16.msra.mxu0 0
      %727 = vmatprep.subr.bf16.mxu0 0
      %728 = vmatpush2.bf16.msra.mxu0 0
      %729 = vmatprep.subr.bf16.mxu0 0
      %730 = vmatpush2.bf16.msra.mxu0 0
      %731 = vmatprep.subr.bf16.mxu0 0
      %732 = vmatpush2.bf16.msra.mxu0 0
      %733 = vmatprep.subr.bf16.mxu0 0
      %734 = vmatpush2.bf16.msra.mxu0 0
      %735 = vmatprep.mubr.bf16.mxu0 0
      %736 = vmatmul.mubr.bf16.gmra.mxu0 %v701
      %v737 = vpop.f32.mrf.mxu0
      %v738 = vadd.f32 0.0, %v737
      %v739 = vpop.f32.mrf.mxu0
      %v740 = vadd.f32 0.0, %v739
      %v741 = vpop.f32.mrf.mxu0
      %v742 = vpop.f32.mrf.mxu0
      %743 = vdwg.mxu0
      %v744 = vadd.f32 %v692, %v738
      %v745 = vadd.f32 %v694, %v740
      %v746 = vmax.f32 %v614, %v744
      %v747 = vmax.f32 %v615, %v745
      %v748 = vmax.f32 %v746, %v747
      %v749 = vld [vmem:[%s2] sm:$0x1]
      %v751 = vlaneseq
      %v752 = vshrl.u32 %v751, 7
      %v753 = vsub.s32 0, %v752
      %v754 = vrot.slane %v749, %v753
      %v756 = vadd.f32 %v748, %v754
      %v757 = vmax.f32 %v756, 0.0
      %v758 = vpack.c.bf16 %v757, %v757
      %759 = vst [vmem:[%s168] sm:$0xf] %v758
      %p760 = scmp.lt.s32.totalorder %s14, 1
      %s761 = scalar_select %p760, %s14, 1
      %s762 = smul.addr %s761, 4
      %s763 = scalar_lea.vmem %s3, %s762
      // Predicated region
      $region33: #{simple_cnn_forward.3} parent=31 // pred_check
        %p764 = pneg %p100
      $region34: #{simple_cnn_forward.3} parent=31 // pred_check_branch
        %766 = sbr.rel (%p764) target = $region36
      $region35: #{simple_cnn_forward.3} parent=31 // pred_region
        _
      $region36: #{simple_cnn_forward.3} parent=31 // pred_fallthru
        _
    $region32: #{simple_cnn_forward.3} parent=5 // pred_fallthru
      _
    %p767 = scmp.le.s32.totalorder 2, %s9
    // Predicated region
    $region37: #{simple_cnn_forward.3} parent=5 // pred_check
      %p768 = pneg %p767
    $region38: #{simple_cnn_forward.3} parent=5 // pred_check_branch
      %770 = sbr.rel (%p768) target = $region40
    $region39: #{simple_cnn_forward.3} parent=5 // pred_region
      %s771 = ssub.s32 %s9, 2
      // Predicated region
      $region41: #{simple_cnn_forward.3} parent=39 // pred_check
        %p772 = pneg %p106
      $region42: #{simple_cnn_forward.3} parent=39 // pred_check_branch
        %774 = sbr.rel (%p772) target = $region44
      $region43: #{simple_cnn_forward.3} parent=39 // pred_region
        %p775 = scmp.lt.s32.totalorder %s15, 1
        %s776 = scalar_select %p775, %s15, 1
        %s777 = smul.addr %s776, 4
        %s778 = scalar_lea.vmem %s3, %s777
      $region44: #{simple_cnn_forward.3} parent=39 // pred_fallthru
        _
    $region40: #{simple_cnn_forward.3} parent=5 // pred_fallthru
      _
  $region6: #{simple_cnn_forward.3} parent=0 // loop_footer
    %s13 = sadd.s32 1, %s9
  $region7: #{simple_cnn_forward.3} parent=0 // loop_footer_branch
    %8 = sbr.rel target = $region3
  $region8: #{simple_cnn_forward.3} parent=0 // loop_exit
    _

// kernel: simple_cnn_forward.5
$region0: #{simple_cnn_forward.5}
  #allocation0 [shape = 'u32[]', space=smem, size = 0x4, offset = 0x4, fixed_abs, tag = 'smem constant byte address 0x4 - core index']
  #allocation1 [shape = 'u32[144,128]{1,0:T(1,128)}', space=vmem, size = 0x12000, scoped, tag = 'internal scratch']
  #allocation2 [shape = 'f32[2,128]{1,0:T(2,128)}', space=vmem, size = 0x400, scoped, tag = 'scratch operand']
  %s0 = inlined_call_operand.vmem [shape: bf16[2,512], index: 0, kind: input, shape index: {}]
  %s1 = inlined_call_operand.vmem [shape: bf16[512,128], index: 1, kind: input, shape index: {}]
  %s2 = inlined_call_operand.vmem [shape: f32[1,128], index: 2, kind: input, shape index: {}]
  %s3 = inlined_call_operand.vmem [shape: bf16[128,128], index: 3, kind: input, shape index: {}]
  %s4 = inlined_call_operand.vmem [shape: f32[1,128], index: 4, kind: input, shape index: {}]
  %s5 = inlined_call_operand.hbm [shape: f32[2,128], index: 5, kind: output, shape index: {}]
  %s6 = sld [smem:[#allocation0]]
  $region38: #{simple_cnn_forward.5} parent=0
    _
  %s8 = ssub.s32 1, %s6
  %s9 = scalar_select 0, %s8, %s6
  $region1: #{simple_cnn_forward.5} parent=0
    #allocation3 [shape = 'u8[1024]{0}', space=vmem, size = 0x400, scoped, tag = 'output window, operand 0, single buffered']
    #allocation4 [shape = 's32[1]{0}', space=sflag, size = 0x4, scoped, tag = 'scoped memory for simple_cnn_forward.5']
    %10 = vsyncpa [#allocation4], 0
    // Predicated region
    $region2: #{simple_cnn_forward.5} parent=1 // pred_check
      _
    $region3: #{simple_cnn_forward.5} parent=1 // pred_check_branch
      %12 = sbr.rel (0) target = $region5
    $region4: #{simple_cnn_forward.5} parent=1 // pred_region
      _
    $region5: #{simple_cnn_forward.5} parent=1 // pred_fallthru
      _
    // Predicated region
    $region6: #{simple_cnn_forward.5} parent=1 // pred_check
      _
    $region7: #{simple_cnn_forward.5} parent=1 // pred_check_branch
      %14 = sbr.rel (0) target = $region9
    $region8: #{simple_cnn_forward.5} parent=1 // pred_region
      _
    $region9: #{simple_cnn_forward.5} parent=1 // pred_fallthru
      _
    // Predicated region
    $region10: #{simple_cnn_forward.5} parent=1 // pred_check
      _
    $region11: #{simple_cnn_forward.5} parent=1 // pred_check_branch
      %16 = sbr.rel (0) target = $region13
    $region12: #{simple_cnn_forward.5} parent=1 // pred_region
      _
    $region13: #{simple_cnn_forward.5} parent=1 // pred_fallthru
      _
    // Predicated region
    $region14: #{simple_cnn_forward.5} parent=1 // pred_check
      _
    $region15: #{simple_cnn_forward.5} parent=1 // pred_check_branch
      %18 = sbr.rel (0) target = $region17
    $region16: #{simple_cnn_forward.5} parent=1 // pred_region
      _
    $region17: #{simple_cnn_forward.5} parent=1 // pred_fallthru
      _
    // Predicated region
    $region18: #{simple_cnn_forward.5} parent=1 // pred_check
      _
    $region19: #{simple_cnn_forward.5} parent=1 // pred_check_branch
      %20 = sbr.rel (0) target = $region21
    $region20: #{simple_cnn_forward.5} parent=1 // pred_region
      _
    $region21: #{simple_cnn_forward.5} parent=1 // pred_fallthru
      _
    %p22 = scmp.eq.s32.totalorder 0, 0
    // Predicated region
    $region22: #{simple_cnn_forward.5} parent=1 // pred_check
      %p23 = pneg %p22
    $region23: #{simple_cnn_forward.5} parent=1 // pred_check_branch
      %25 = sbr.rel (%p23) target = $region25
    $region24: #{simple_cnn_forward.5} parent=1 // pred_region
      %26 = vst [vmem:[#allocation2] sm:$0x3] 0.0
    $region25: #{simple_cnn_forward.5} parent=1 // pred_fallthru
      _
    %v27 = vld [vmem:[#allocation2] sm:$0x3]
    %v28 = vld [vmem:[%s0] sm:$0xf]
    %v29 = vld [vmem:[%s1] sm:$0xf]
    %v30 = vld [vmem:[%s1 + $0x4] sm:$0xf]
    %v31 = vld [vmem:[%s1 + $0x8] sm:$0xf]
    %v32 = vld [vmem:[%s1 + $0xc] sm:$0xf]
    %v33 = vld [vmem:[%s1 + $0x10] sm:$0xf]
    %v34 = vld [vmem:[%s1 + $0x14] sm:$0xf]
    %v35 = vld [vmem:[%s1 + $0x18] sm:$0xf]
    %v36 = vld [vmem:[%s1 + $0x1c] sm:$0xf]
    %v37 = vld [vmem:[%s1 + $0x20] sm:$0xf]
    %v38 = vld [vmem:[%s1 + $0x24] sm:$0xf]
    %v39 = vld [vmem:[%s1 + $0x28] sm:$0xf]
    %v40 = vld [vmem:[%s1 + $0x2c] sm:$0xf]
    %v41 = vld [vmem:[%s1 + $0x30] sm:$0xf]
    %v42 = vld [vmem:[%s1 + $0x34] sm:$0xf]
    %v43 = vld [vmem:[%s1 + $0x38] sm:$0xf]
    %v44 = vld [vmem:[%s1 + $0x3c] sm:$0xf]
    %v45 = vld [vmem:[%s1 + $0x40] sm:$0xf]
    %v46 = vld [vmem:[%s1 + $0x44] sm:$0xf]
    %v47 = vld [vmem:[%s1 + $0x48] sm:$0xf]
    %v48 = vld [vmem:[%s1 + $0x4c] sm:$0xf]
    %v49 = vld [vmem:[%s1 + $0x50] sm:$0xf]
    %v50 = vld [vmem:[%s1 + $0x54] sm:$0xf]
    %v51 = vld [vmem:[%s1 + $0x58] sm:$0xf]
    %v52 = vld [vmem:[%s1 + $0x5c] sm:$0xf]
    %v53 = vld [vmem:[%s1 + $0x60] sm:$0xf]
    %v54 = vld [vmem:[%s1 + $0x64] sm:$0xf]
    %v55 = vld [vmem:[%s1 + $0x68] sm:$0xf]
    %v56 = vld [vmem:[%s1 + $0x6c] sm:$0xf]
    %v57 = vld [vmem:[%s1 + $0x70] sm:$0xf]
    %v58 = vld [vmem:[%s1 + $0x74] sm:$0xf]
    %v59 = vld [vmem:[%s1 + $0x78] sm:$0xf]
    %v60 = vld [vmem:[%s1 + $0x7c] sm:$0xf]
    %v61 = vld [vmem:[%s1 + $0x80] sm:$0xf]
    %v62 = vld [vmem:[%s1 + $0x84] sm:$0xf]
    %v63 = vld [vmem:[%s1 + $0x88] sm:$0xf]
    %v64 = vld [vmem:[%s1 + $0x8c] sm:$0xf]
    %v65 = vld [vmem:[%s1 + $0x90] sm:$0xf]
    %v66 = vld [vmem:[%s1 + $0x94] sm:$0xf]
    %v67 = vld [vmem:[%s1 + $0x98] sm:$0xf]
    %v68 = vld [vmem:[%s1 + $0x9c] sm:$0xf]
    %v69 = vld [vmem:[%s1 + $0xa0] sm:$0xf]
    %v70 = vld [vmem:[%s1 + $0xa4] sm:$0xf]
    %v71 = vld [vmem:[%s1 + $0xa8] sm:$0xf]
    %v72 = vld [vmem:[%s1 + $0xac] sm:$0xf]
    %v73 = vld [vmem:[%s1 + $0xb0] sm:$0xf]
    %v74 = vld [vmem:[%s1 + $0xb4] sm:$0xf]
    %v75 = vld [vmem:[%s1 + $0xb8] sm:$0xf]
    %v76 = vld [vmem:[%s1 + $0xbc] sm:$0xf]
    %v77 = vld [vmem:[%s1 + $0xc0] sm:$0xf]
    %v78 = vld [vmem:[%s1 + $0xc4] sm:$0xf]
    %v79 = vld [vmem:[%s1 + $0xc8] sm:$0xf]
    %v80 = vld [vmem:[%s1 + $0xcc] sm:$0xf]
    %v81 = vld [vmem:[%s1 + $0xd0] sm:$0xf]
    %v82 = vld [vmem:[%s1 + $0xd4] sm:$0xf]
    %v83 = vld [vmem:[%s1 + $0xd8] sm:$0xf]
    %v84 = vld [vmem:[%s1 + $0xdc] sm:$0xf]
    %v85 = vld [vmem:[%s1 + $0xe0] sm:$0xf]
    %v86 = vld [vmem:[%s1 + $0xe4] sm:$0xf]
    %v87 = vld [vmem:[%s1 + $0xe8] sm:$0xf]
    %v88 = vld [vmem:[%s1 + $0xec] sm:$0xf]
    %v89 = vld [vmem:[%s1 + $0xf0] sm:$0xf]
    %v90 = vld [vmem:[%s1 + $0xf4] sm:$0xf]
    %v91 = vld [vmem:[%s1 + $0xf8] sm:$0xf]
    %v92 = vld [vmem:[%s1 + $0xfc] sm:$0xf]
    %v95 = vunpack.c.l.s4 1966171168
    %v96 = vunpack.c.0.s8 %v95
    %v97 = vlaneseq
    %v98 = vshrl.u32 %v97, 7
    %v99 = vsub.s32 %v96, %v98
    %v100 = vrot.slane %v28, %v99
    %v101 = vcombine.high %v100, %v100
    %v103 = vunpack.c.l.s4 1966171168
    %v104 = vunpack.c.0.s8 %v103
    %v105 = vlaneseq
    %v106 = vshrl.u32 %v105, 7
    %v107 = vsub.s32 %v104, %v106
    %v108 = vrot.slane %v100, %v107
    %v110 = vunpack.c.l.s4 1966171168
    %v111 = vunpack.c.0.s8 %v110
    %v112 = vlaneseq
    %v113 = vshrl.u32 %v112, 7
    %v114 = vsub.s32 %v111, %v113
    %v115 = vrot.slane %v101, %v114
    %v116 = vcombine.high %v108, %v108
    %v117 = vcombine.high %v115, %v115
    %v186 = vunpack.c.l.b16 %v29
    %v187 = vunpack.c.l.b16 %v30
    %v188 = vunpack.c.l.b16 %v31
    %v189 = vunpack.c.l.b16 %v32
    %v190 = vunpack.c.l.b16 %v33
    %v191 = vunpack.c.l.b16 %v34
    %v192 = vunpack.c.l.b16 %v35
    %v193 = vunpack.c.l.b16 %v36
    %v194 = vunpack.c.l.b16 %v37
    %v195 = vunpack.c.l.b16 %v38
    %v196 = vunpack.c.l.b16 %v39
    %v197 = vunpack.c.l.b16 %v40
    %v198 = vunpack.c.l.b16 %v41
    %v199 = vunpack.c.l.b16 %v42
    %v200 = vunpack.c.l.b16 %v43
    %v201 = vunpack.c.l.b16 %v44
    %v202 = vunpack.c.l.b16 %v45
    %v203 = vunpack.c.l.b16 %v46
    %v204 = vunpack.c.l.b16 %v47
    %v205 = vunpack.c.l.b16 %v48
    %v206 = vunpack.c.l.b16 %v49
    %v207 = vunpack.c.l.b16 %v50
    %v208 = vunpack.c.l.b16 %v51
    %v209 = vunpack.c.l.b16 %v52
    %v210 = vunpack.c.l.b16 %v53
    %v211 = vunpack.c.l.b16 %v54
    %v212 = vunpack.c.l.b16 %v55
    %v213 = vunpack.c.l.b16 %v56
    %v214 = vunpack.c.l.b16 %v57
    %v215 = vunpack.c.l.b16 %v58
    %v216 = vunpack.c.l.b16 %v59
    %v217 = vunpack.c.l.b16 %v60
    %v218 = vunpack.c.l.b16 %v61
    %v219 = vunpack.c.l.b16 %v62
    %v220 = vunpack.c.l.b16 %v63
    %v221 = vunpack.c.l.b16 %v64
    %v222 = vunpack.c.l.b16 %v65
    %v223 = vunpack.c.l.b16 %v66
    %v224 = vunpack.c.l.b16 %v67
    %v225 = vunpack.c.l.b16 %v68
    %v226 = vunpack.c.l.b16 %v69
    %v227 = vunpack.c.l.b16 %v70
    %v228 = vunpack.c.l.b16 %v71
    %v229 = vunpack.c.l.b16 %v72
    %v230 = vunpack.c.l.b16 %v73
    %v231 = vunpack.c.l.b16 %v74
    %v232 = vunpack.c.l.b16 %v75
    %v233 = vunpack.c.l.b16 %v76
    %v234 = vunpack.c.l.b16 %v77
    %v235 = vunpack.c.l.b16 %v78
    %v236 = vunpack.c.l.b16 %v79
    %v237 = vunpack.c.l.b16 %v80
    %v238 = vunpack.c.l.b16 %v81
    %v239 = vunpack.c.l.b16 %v82
    %v240 = vunpack.c.l.b16 %v83
    %v241 = vunpack.c.l.b16 %v84
    %v242 = vunpack.c.l.b16 %v85
    %v243 = vunpack.c.l.b16 %v86
    %v244 = vunpack.c.l.b16 %v87
    %v245 = vunpack.c.l.b16 %v88
    %v246 = vunpack.c.l.b16 %v89
    %v247 = vunpack.c.l.b16 %v90
    %v248 = vunpack.c.l.b16 %v91
    %v249 = vunpack.c.l.b16 %v92
    %v250 = vpack.c.b16 %v187, %v186
    %v251 = vpack.c.b16 %v189, %v188
    %v252 = vpack.c.b16 %v191, %v190
    %v253 = vpack.c.b16 %v193, %v192
    %v254 = vpack.c.b16 %v195, %v194
    %v255 = vpack.c.b16 %v197, %v196
    %v256 = vpack.c.b16 %v199, %v198
    %v257 = vpack.c.b16 %v201, %v200
    %v258 = vpack.c.b16 %v203, %v202
    %v259 = vpack.c.b16 %v205, %v204
    %v260 = vpack.c.b16 %v207, %v206
    %v261 = vpack.c.b16 %v209, %v208
    %v262 = vpack.c.b16 %v211, %v210
    %v263 = vpack.c.b16 %v213, %v212
    %v264 = vpack.c.b16 %v215, %v214
    %v265 = vpack.c.b16 %v217, %v216
    %v266 = vpack.c.b16 %v219, %v218
    %v267 = vpack.c.b16 %v221, %v220
    %v268 = vpack.c.b16 %v223, %v222
    %v269 = vpack.c.b16 %v225, %v224
    %v270 = vpack.c.b16 %v227, %v226
    %v271 = vpack.c.b16 %v229, %v228
    %v272 = vpack.c.b16 %v231, %v230
    %v273 = vpack.c.b16 %v233, %v232
    %v274 = vpack.c.b16 %v235, %v234
    %v275 = vpack.c.b16 %v237, %v236
    %v276 = vpack.c.b16 %v239, %v238
    %v277 = vpack.c.b16 %v241, %v240
    %v278 = vpack.c.b16 %v243, %v242
    %v279 = vpack.c.b16 %v245, %v244
    %v280 = vpack.c.b16 %v247, %v246
    %v281 = vpack.c.b16 %v249, %v248
    %314 = vmatprep.subr.bf16.mxu0 0
    %315 = vmatpush1.bf16.msra.mxu0 %v257
    %316 = vmatprep.subr.bf16.mxu0 0
    %317 = vmatpush1.bf16.msra.mxu0 %v256
    %318 = vmatprep.subr.bf16.mxu0 0
    %319 = vmatpush1.bf16.msra.mxu0 %v255
    %320 = vmatprep.subr.bf16.mxu0 0
    %321 = vmatpush1.bf16.msra.mxu0 %v254
    %322 = vmatprep.subr.bf16.mxu0 0
    %323 = vmatpush1.bf16.msra.mxu0 %v253
    %324 = vmatprep.subr.bf16.mxu0 0
    %325 = vmatpush1.bf16.msra.mxu0 %v252
    %326 = vmatprep.subr.bf16.mxu0 0
    %327 = vmatpush1.bf16.msra.mxu0 %v251
    %328 = vmatprep.subr.bf16.mxu0 0
    %329 = vmatpush1.bf16.msra.mxu0 %v250
    %330 = vmatprep.subr.bf16.mxu0 0
    %331 = vmatpush2.bf16.msra.mxu0 %v265
    %332 = vmatprep.subr.bf16.mxu0 0
    %333 = vmatpush2.bf16.msra.mxu0 %v264
    %334 = vmatprep.subr.bf16.mxu0 0
    %335 = vmatpush2.bf16.msra.mxu0 %v263
    %336 = vmatprep.subr.bf16.mxu0 0
    %337 = vmatpush2.bf16.msra.mxu0 %v262
    %338 = vmatprep.subr.bf16.mxu0 0
    %339 = vmatpush2.bf16.msra.mxu0 %v261
    %340 = vmatprep.subr.bf16.mxu0 0
    %341 = vmatpush2.bf16.msra.mxu0 %v260
    %342 = vmatprep.subr.bf16.mxu0 0
    %343 = vmatpush2.bf16.msra.mxu0 %v259
    %344 = vmatprep.subr.bf16.mxu0 0
    %345 = vmatpush2.bf16.msra.mxu0 %v258
    %346 = vmatprep.mubr.bf16.mxu0 %v115
    %347 = vmatmul.mubr.bf16.gmra.mxu0 %v108
    %v348 = vpop.f32.mrf.mxu0
    %v349 = vadd.f32 0.0, %v348
    %v350 = vpop.f32.mrf.mxu0
    %v351 = vpop.f32.mrf.mxu0
    %v352 = vpop.f32.mrf.mxu0
    %353 = vdwg.mxu0
    %354 = vmatprep.subr.bf16.mxu0 0
    %355 = vmatpush1.bf16.msra.mxu0 %v273
    %356 = vmatprep.subr.bf16.mxu0 0
    %357 = vmatpush1.bf16.msra.mxu0 %v272
    %358 = vmatprep.subr.bf16.mxu0 0
    %359 = vmatpush1.bf16.msra.mxu0 %v271
    %360 = vmatprep.subr.bf16.mxu0 0
    %361 = vmatpush1.bf16.msra.mxu0 %v270
    %362 = vmatprep.subr.bf16.mxu0 0
    %363 = vmatpush1.bf16.msra.mxu0 %v269
    %364 = vmatprep.subr.bf16.mxu0 0
    %365 = vmatpush1.bf16.msra.mxu0 %v268
    %366 = vmatprep.subr.bf16.mxu0 0
    %367 = vmatpush1.bf16.msra.mxu0 %v267
    %368 = vmatprep.subr.bf16.mxu0 0
    %369 = vmatpush1.bf16.msra.mxu0 %v266
    %370 = vmatprep.subr.bf16.mxu0 0
    %371 = vmatpush2.bf16.msra.mxu0 %v281
    %372 = vmatprep.subr.bf16.mxu0 0
    %373 = vmatpush2.bf16.msra.mxu0 %v280
    %374 = vmatprep.subr.bf16.mxu0 0
    %375 = vmatpush2.bf16.msra.mxu0 %v279
    %376 = vmatprep.subr.bf16.mxu0 0
    %377 = vmatpush2.bf16.msra.mxu0 %v278
    %378 = vmatprep.subr.bf16.mxu0 0
    %379 = vmatpush2.bf16.msra.mxu0 %v277
    %380 = vmatprep.subr.bf16.mxu0 0
    %381 = vmatpush2.bf16.msra.mxu0 %v276
    %382 = vmatprep.subr.bf16.mxu0 0
    %383 = vmatpush2.bf16.msra.mxu0 %v275
    %384 = vmatprep.subr.bf16.mxu0 0
    %385 = vmatpush2.bf16.msra.mxu0 %v274
    %386 = vmatprep.mubr.bf16.mxu0 %v117
    %387 = vmatmul.mubr.bf16.gmra.mxu0 %v116
    %v388 = vpop.f32.mrf.mxu0
    %v389 = vadd.f32 %v349, %v388
    %v390 = vpop.f32.mrf.mxu0
    %v391 = vpop.f32.mrf.mxu0
    %v392 = vpop.f32.mrf.mxu0
    %393 = vdwg.mxu0
    %v394 = vadd.f32 %v27, %v389
    %395 = vst [vmem:[#allocation2] sm:$0x3] %v394
    // Predicated region
    $region26: #{simple_cnn_forward.5} parent=1 // pred_check
      %p396 = pneg %p22
    $region27: #{simple_cnn_forward.5} parent=1 // pred_check_branch
      %398 = sbr.rel (%p396) target = $region29
    $region28: #{simple_cnn_forward.5} parent=1 // pred_region
      %v399 = vld [vmem:[#allocation2] sm:$0x3]
      %v400 = vld [vmem:[%s2] sm:$0x1]
      %v402 = vlaneseq
      %v403 = vshrl.u32 %v402, 7
      %v404 = vsub.s32 0, %v403
      %v405 = vrot.slane %v400, %v404
      %v407 = vadd.f32 %v399, %v405
      %v408 = vmax.f32 %v407, 0.0
      %v409 = vpack.c.bf16 %v408, %v408
      %v410 = vld [vmem:[%s3] sm:$0xf]
      %v411 = vld [vmem:[%s3 + $0x4] sm:$0xf]
      %v412 = vld [vmem:[%s3 + $0x8] sm:$0xf]
      %v413 = vld [vmem:[%s3 + $0xc] sm:$0xf]
      %v414 = vld [vmem:[%s3 + $0x10] sm:$0xf]
      %v415 = vld [vmem:[%s3 + $0x14] sm:$0xf]
      %v416 = vld [vmem:[%s3 + $0x18] sm:$0xf]
      %v417 = vld [vmem:[%s3 + $0x1c] sm:$0xf]
      %v418 = vld [vmem:[%s3 + $0x20] sm:$0xf]
      %v419 = vld [vmem:[%s3 + $0x24] sm:$0xf]
      %v420 = vld [vmem:[%s3 + $0x28] sm:$0xf]
      %v421 = vld [vmem:[%s3 + $0x2c] sm:$0xf]
      %v422 = vld [vmem:[%s3 + $0x30] sm:$0xf]
      %v423 = vld [vmem:[%s3 + $0x34] sm:$0xf]
      %v424 = vld [vmem:[%s3 + $0x38] sm:$0xf]
      %v425 = vld [vmem:[%s3 + $0x3c] sm:$0xf]
      %v426 = vld [vmem:[%s4] sm:$0x1]
      %v428 = vlaneseq
      %v429 = vshrl.u32 %v428, 7
      %v430 = vsub.s32 0, %v429
      %v431 = vrot.slane %v426, %v430
      %v449 = vunpack.c.l.b16 %v410
      %v450 = vunpack.c.l.b16 %v411
      %v451 = vunpack.c.l.b16 %v412
      %v452 = vunpack.c.l.b16 %v413
      %v453 = vunpack.c.l.b16 %v414
      %v454 = vunpack.c.l.b16 %v415
      %v455 = vunpack.c.l.b16 %v416
      %v456 = vunpack.c.l.b16 %v417
      %v457 = vunpack.c.l.b16 %v418
      %v458 = vunpack.c.l.b16 %v419
      %v459 = vunpack.c.l.b16 %v420
      %v460 = vunpack.c.l.b16 %v421
      %v461 = vunpack.c.l.b16 %v422
      %v462 = vunpack.c.l.b16 %v423
      %v463 = vunpack.c.l.b16 %v424
      %v464 = vunpack.c.l.b16 %v425
      %v465 = vpack.c.b16 %v450, %v449
      %v466 = vpack.c.b16 %v452, %v451
      %v467 = vpack.c.b16 %v454, %v453
      %v468 = vpack.c.b16 %v456, %v455
      %v469 = vpack.c.b16 %v458, %v457
      %v470 = vpack.c.b16 %v460, %v459
      %v471 = vpack.c.b16 %v462, %v461
      %v472 = vpack.c.b16 %v464, %v463
      %481 = vmatprep.subr.bf16.mxu0 0
      %482 = vmatpush1.bf16.msra.mxu0 %v472
      %483 = vmatprep.subr.bf16.mxu0 0
      %484 = vmatpush1.bf16.msra.mxu0 %v471
      %485 = vmatprep.subr.bf16.mxu0 0
      %486 = vmatpush1.bf16.msra.mxu0 %v470
      %487 = vmatprep.subr.bf16.mxu0 0
      %488 = vmatpush1.bf16.msra.mxu0 %v469
      %489 = vmatprep.subr.bf16.mxu0 0
      %490 = vmatpush1.bf16.msra.mxu0 %v468
      %491 = vmatprep.subr.bf16.mxu0 0
      %492 = vmatpush1.bf16.msra.mxu0 %v467
      %493 = vmatprep.subr.bf16.mxu0 0
      %494 = vmatpush1.bf16.msra.mxu0 %v466
      %495 = vmatprep.subr.bf16.mxu0 0
      %496 = vmatpush1.bf16.msra.mxu0 %v465
      %497 = vmatprep.subr.bf16.mxu0 0
      %498 = vmatpush2.bf16.msra.mxu0 0
      %499 = vmatprep.subr.bf16.mxu0 0
      %500 = vmatpush2.bf16.msra.mxu0 0
      %501 = vmatprep.subr.bf16.mxu0 0
      %502 = vmatpush2.bf16.msra.mxu0 0
      %503 = vmatprep.subr.bf16.mxu0 0
      %504 = vmatpush2.bf16.msra.mxu0 0
      %505 = vmatprep.subr.bf16.mxu0 0
      %506 = vmatpush2.bf16.msra.mxu0 0
      %507 = vmatprep.subr.bf16.mxu0 0
      %508 = vmatpush2.bf16.msra.mxu0 0
      %509 = vmatprep.subr.bf16.mxu0 0
      %510 = vmatpush2.bf16.msra.mxu0 0
      %511 = vmatprep.subr.bf16.mxu0 0
      %512 = vmatpush2.bf16.msra.mxu0 0
      %513 = vmatprep.mubr.bf16.mxu0 0
      %514 = vmatmul.mubr.bf16.gmra.mxu0 %v409
      %v515 = vpop.f32.mrf.mxu0
      %v516 = vadd.f32 %v431, %v515
      %v517 = vpop.f32.mrf.mxu0
      %v518 = vpop.f32.mrf.mxu0
      %v519 = vpop.f32.mrf.mxu0
      %520 = vdwg.mxu0
      %521 = vst [vmem:[#allocation3] sm:$0x3] %v516
    $region29: #{simple_cnn_forward.5} parent=1 // pred_fallthru
      _
    // Predicated region
    $region30: #{simple_cnn_forward.5} parent=1 // pred_check
      _
    $region31: #{simple_cnn_forward.5} parent=1 // pred_check_branch
      %523 = sbr.rel (0) target = $region33
    $region32: #{simple_cnn_forward.5} parent=1 // pred_region
      %s525 = ssub.s32 32, 32
      %526 = vsyncadd [#allocation4], %s525
      %s528 = sshll.u32 [#allocation3], 4
      %s529 = int_to_ptr.vmem [resolvable:$true] %s528
      %531 = dma.vmem_to_hbm [thread:$0]  %s529, 32, %s5, [#allocation4]
    $region33: #{simple_cnn_forward.5} parent=1 // pred_fallthru
      _
    // Predicated region
    $region34: #{simple_cnn_forward.5} parent=1 // pred_check
      _
    $region35: #{simple_cnn_forward.5} parent=1 // pred_check_branch
      %533 = sbr.rel (0) target = $region37
    $region36: #{simple_cnn_forward.5} parent=1 // pred_region
      %534 = dma.done [#allocation4], 32
    $region37: #{simple_cnn_forward.5} parent=1 // pred_fallthru
      _
    %535 = vsyncpa [#allocation4], 1

// kernel: simple_cnn_forward.4
$region0: #{simple_cnn_forward.4}
  #allocation0 [shape = 'u32[]', space=smem, size = 0x4, offset = 0x4, fixed_abs, tag = 'smem constant byte address 0x4 - core index']
  #allocation1 [shape = 'u32[144,128]{1,0:T(1,128)}', space=vmem, size = 0x12000, scoped, tag = 'internal scratch']
  %s0 = inlined_call_operand.vmem [shape: bf16[2,10,256], index: 0, kind: input, shape index: {}]
  %s1 = inlined_call_operand.vmem [shape: bf16[3,256,256], index: 1, kind: input, shape index: {}]
  %s2 = inlined_call_operand.vmem [shape: f32[1,128], index: 2, kind: input, shape index: {}]
  %s3 = inlined_call_operand.vmem [shape: bf16[2,4,128], index: 3, kind: output, shape index: {}]
  %s4 = sld [smem:[#allocation0]]
  $region45: #{simple_cnn_forward.4} parent=0
    _
  %s6 = ssub.s32 1, %s4
  %s7 = scalar_select 0, %s6, %s4
  loop: start=0, step=1, limit=4
  $region2: #{simple_cnn_forward.4} parent=0 // loop_pre_header
    _
  $region3: #{simple_cnn_forward.4} parent=0 // loop_header
    %s9 = sphi 0, %s13
    %p10 = scmp.ge.s32.totalorder %s9, 4
    %s19 = sphi 0, %s21
    %s22 = sphi 0, %s19
    %s23 = sphi 0, %s22
    %s39 = sphi 0, %s23
    %s43 = sphi 0, %s43
    %s45 = sphi 0, %s43
    %s46 = sphi 0, %s45
    %s60 = sphi 0, %s46
    %s64 = sphi 0, %s64
    %s66 = sphi 0, %s64
    %s67 = sphi 0, %s66
    %s81 = sphi 0, %s67
    %s87 = sphi 0, %s89
    %s90 = sphi 0, %s87
    %s91 = sphi 0, %s90
    %s107 = sphi 0, %s91
  $region4: #{simple_cnn_forward.4} parent=0 // loop_header_branch
    %12 = sbr.rel (%p10) target = $region8
  $region5: #{simple_cnn_forward.4} parent=0 // loop_body
    %s14 = ssub.s32 %s9, 1
    %s15 = ssub.s32 %s9, 2
    %s16 = sadd.s32 %s9, 1
    %s17 = ssub.s32 %s9, %s16
    %p18 = scmp.eq.s32.totalorder %s17, 0
    %s20 = sadd.s32 %s19, 1
    %s21 = scalar_select %p18, %s19, %s20
    %p24 = pneg %p18
    %p25 = scmp.eq.s32.totalorder %s9, 1
    %p26 = por %p24, %p25
    %p27 = scmp.ne.s32.totalorder %s19, %s22
    %p28 = scmp.eq.s32.totalorder %s9, 0
    %p29 = por %p27, %p28
    %p30 = scmp.ne.s32.totalorder %s19, %s22
    %p31 = scmp.eq.s32.totalorder %s14, 1
    %p32 = por %p30, %p31
    %p33 = scmp.ne.s32.totalorder %s22, %s23
    %p34 = scmp.eq.s32.totalorder %s14, 0
    %p35 = por %p33, %p34
    %p36 = scmp.ne.s32.totalorder %s22, %s23
    %p37 = scmp.eq.s32.totalorder %s15, 1
    %p38 = por %p36, %p37
    %p40 = scmp.ne.s32.totalorder %s23, %s39
    %p41 = scmp.eq.s32.totalorder %s15, 0
    %p42 = por %p40, %p41
    %s44 = sadd.s32 %s43, 1
    %p47 = scmp.eq.s32.totalorder %s9, 1
    %p48 = scmp.ne.s32.totalorder %s43, %s45
    %p49 = scmp.eq.s32.totalorder %s9, 0
    %p50 = por %p48, %p49
    %p51 = scmp.ne.s32.totalorder %s43, %s45
    %p52 = scmp.eq.s32.totalorder %s14, 1
    %p53 = por %p51, %p52
    %p54 = scmp.ne.s32.totalorder %s45, %s46
    %p55 = scmp.eq.s32.totalorder %s14, 0
    %p56 = por %p54, %p55
    %p57 = scmp.ne.s32.totalorder %s45, %s46
    %p58 = scmp.eq.s32.totalorder %s15, 1
    %p59 = por %p57, %p58
    %p61 = scmp.ne.s32.totalorder %s46, %s60
    %p62 = scmp.eq.s32.totalorder %s15, 0
    %p63 = por %p61, %p62
    %s65 = sadd.s32 %s64, 1
    %p68 = scmp.eq.s32.totalorder %s9, 1
    %p69 = scmp.ne.s32.totalorder %s64, %s66
    %p70 = scmp.eq.s32.totalorder %s9, 0
    %p71 = por %p69, %p70
    %p72 = scmp.ne.s32.totalorder %s64, %s66
    %p73 = scmp.eq.s32.totalorder %s14, 1
    %p74 = por %p72, %p73
    %p75 = scmp.ne.s32.totalorder %s66, %s67
    %p76 = scmp.eq.s32.totalorder %s14, 0
    %p77 = por %p75, %p76
    %p78 = scmp.ne.s32.totalorder %s66, %s67
    %p79 = scmp.eq.s32.totalorder %s15, 1
    %p80 = por %p78, %p79
    %p82 = scmp.ne.s32.totalorder %s67, %s81
    %p83 = scmp.eq.s32.totalorder %s15, 0
    %p84 = por %p82, %p83
    %s85 = ssub.s32 %s9, %s16
    %p86 = scmp.eq.s32.totalorder %s85, 0
    %s88 = sadd.s32 %s87, 1
    %s89 = scalar_select %p86, %s87, %s88
    %p92 = pneg %p86
    %p93 = scmp.eq.s32.totalorder %s9, 1
    %p94 = por %p92, %p93
    %p95 = scmp.ne.s32.totalorder %s87, %s90
    %p96 = scmp.eq.s32.totalorder %s9, 0
    %p97 = por %p95, %p96
    %p98 = scmp.ne.s32.totalorder %s87, %s90
    %p99 = scmp.eq.s32.totalorder %s14, 1
    %p100 = por %p98, %p99
    %p101 = scmp.ne.s32.totalorder %s90, %s91
    %p102 = scmp.eq.s32.totalorder %s14, 0
    %p103 = por %p101, %p102
    %p104 = scmp.ne.s32.totalorder %s90, %s91
    %p105 = scmp.eq.s32.totalorder %s15, 1
    %p106 = por %p104, %p105
    %p108 = scmp.ne.s32.totalorder %s91, %s107
    %p109 = scmp.eq.s32.totalorder %s15, 0
    %p110 = por %p108, %p109
    %p111 = scmp.le.s32.totalorder 1, %s9
    %p112 = scmp.lt.s32.totalorder %s9, 3
    %p113 = pnand %p111, %p112
    %p114 = pneg %p113
    // Predicated region
    $region9: #{simple_cnn_forward.4} parent=5 // pred_check
      _
    $region10: #{simple_cnn_forward.4} parent=5 // pred_check_branch
      %116 = sbr.rel (%p113) target = $region12
    $region11: #{simple_cnn_forward.4} parent=5 // pred_region
      %s117 = ssub.s32 %s9, 1
      // Predicated region
      $region13: #{simple_cnn_forward.4} parent=11 // pred_check
        %p118 = pneg %p56
      $region14: #{simple_cnn_forward.4} parent=11 // pred_check_branch
        %120 = sbr.rel (%p118) target = $region16
      $region15: #{simple_cnn_forward.4} parent=11 // pred_region
        _
      $region16: #{simple_cnn_forward.4} parent=11 // pred_fallthru
        _
      // Predicated region
      $region17: #{simple_cnn_forward.4} parent=11 // pred_check
        %p121 = pneg %p77
      $region18: #{simple_cnn_forward.4} parent=11 // pred_check_branch
        %123 = sbr.rel (%p121) target = $region20
      $region19: #{simple_cnn_forward.4} parent=11 // pred_region
        _
      $region20: #{simple_cnn_forward.4} parent=11 // pred_fallthru
        _
    $region12: #{simple_cnn_forward.4} parent=5 // pred_fallthru
      _
    %p124 = scmp.lt.s32.totalorder %s9, 2
    // Predicated region
    $region21: #{simple_cnn_forward.4} parent=5 // pred_check
      %p125 = pneg %p124
    $region22: #{simple_cnn_forward.4} parent=5 // pred_check_branch
      %127 = sbr.rel (%p125) target = $region24
    $region23: #{simple_cnn_forward.4} parent=5 // pred_region
      // Predicated region
      $region25: #{simple_cnn_forward.4} parent=23 // pred_check
        %p128 = pneg %p29
      $region26: #{simple_cnn_forward.4} parent=23 // pred_check_branch
        %130 = sbr.rel (%p128) target = $region28
      $region27: #{simple_cnn_forward.4} parent=23 // pred_region
        %p131 = scmp.lt.s32.totalorder %s9, 1
        %s132 = scalar_select %p131, %s9, 1
        %s133 = smul.addr %s132, 4
        %s134 = smul.addr %s133, 4
        %s135 = scalar_lea.vmem %s0, %s134
      $region28: #{simple_cnn_forward.4} parent=23 // pred_fallthru
        _
    $region24: #{simple_cnn_forward.4} parent=5 // pred_fallthru
      _
    %p136 = scmp.le.s32.totalorder 1, %s9
    %p137 = scmp.lt.s32.totalorder %s9, 3
    %p138 = pnand %p136, %p137
    %p139 = pneg %p138
    // Predicated region
    $region29: #{simple_cnn_forward.4} parent=5 // pred_check
      _
    $region30: #{simple_cnn_forward.4} parent=5 // pred_check_branch
      %141 = sbr.rel (%p138) target = $region32
    $region31: #{simple_cnn_forward.4} parent=5 // pred_region
      %s142 = ssub.s32 %s9, 1
      %p143 = scmp.lt.s32.totalorder %s14, 1
      %s144 = scalar_select %p143, %s14, 1
      %s145 = smul.addr %s144, 4
      %s146 = smul.addr %s145, 4
      %s147 = scalar_lea.vmem %s0, %s146
      %p148 = pneg %p35
      %p149 = pneg %p32
      %p150 = pneg %p56
      %p151 = pneg %p53
      %p152 = pneg %p77
      %p153 = pneg %p74
      %p154 = pneg %p103
      %p155 = pneg %p100
      %p156 = scmp.lt.s32.totalorder %s14, 1
      %s157 = scalar_select %p156, %s14, 1
      %s158 = smul.addr %s157, 2
      %s159 = scalar_lea.vmem %s3, %s158
      %p160 = scmp.lt.s32.totalorder %s14, 1
      %s161 = scalar_select %p160, %s14, 1
      %s162 = smul.addr %s161, 4
      %s163 = smul.addr %s162, 4
      %s164 = scalar_lea.vmem %s0, %s163
      %p165 = scmp.lt.s32.totalorder %s14, 1
      %s166 = scalar_select %p165, %s14, 1
      %s167 = smul.addr %s166, 2
      %s168 = scalar_lea.vmem %s3, %s167
      %v169 = vld [vmem:[%s164] sm:$0x33]
      %v170 = vld [vmem:[%s164] sm:$0x77]
      %v171 = vld [vmem:[%s164] sm:$0xcc]
      %v172 = vld [vmem:[%s164 + $0x8] sm:$0x11]
      %v173 = vld [vmem:[%s164] sm:$0x88]
      %v174 = vld [vmem:[%s1] sm:$0xff]
      %v175 = vld [vmem:[%s1 + $0x8] sm:$0xff]
      %v176 = vld [vmem:[%s1 + $0x10] sm:$0xff]
      %v177 = vld [vmem:[%s1 + $0x18] sm:$0xff]
      %v178 = vld [vmem:[%s1 + $0x20] sm:$0xff]
      %v179 = vld [vmem:[%s1 + $0x28] sm:$0xff]
      %v180 = vld [vmem:[%s1 + $0x30] sm:$0xff]
      %v181 = vld [vmem:[%s1 + $0x38] sm:$0xff]
      %v182 = vld [vmem:[%s1 + $0x40] sm:$0xff]
      %v183 = vld [vmem:[%s1 + $0x48] sm:$0xff]
      %v184 = vld [vmem:[%s1 + $0x50] sm:$0xff]
      %v185 = vld [vmem:[%s1 + $0x58] sm:$0xff]
      %v186 = vld [vmem:[%s1 + $0x60] sm:$0xff]
      %v187 = vld [vmem:[%s1 + $0x68] sm:$0xff]
      %v188 = vld [vmem:[%s1 + $0x70] sm:$0xff]
      %v189 = vld [vmem:[%s1 + $0x78] sm:$0xff]
      %v190 = vld [vmem:[%s1 + $0x80] sm:$0xff]
      %v191 = vld [vmem:[%s1 + $0x88] sm:$0xff]
      %v192 = vld [vmem:[%s1 + $0x90] sm:$0xff]
      %v193 = vld [vmem:[%s1 + $0x98] sm:$0xff]
      %v194 = vld [vmem:[%s1 + $0xa0] sm:$0xff]
      %v195 = vld [vmem:[%s1 + $0xa8] sm:$0xff]
      %v196 = vld [vmem:[%s1 + $0xb0] sm:$0xff]
      %v197 = vld [vmem:[%s1 + $0xb8] sm:$0xff]
      %v198 = vld [vmem:[%s1 + $0xc0] sm:$0xff]
      %v199 = vld [vmem:[%s1 + $0xc8] sm:$0xff]
      %v200 = vld [vmem:[%s1 + $0xd0] sm:$0xff]
      %v201 = vld [vmem:[%s1 + $0xd8] sm:$0xff]
      %v202 = vld [vmem:[%s1 + $0xe0] sm:$0xff]
      %v203 = vld [vmem:[%s1 + $0xe8] sm:$0xff]
      %v204 = vld [vmem:[%s1 + $0xf0] sm:$0xff]
      %v205 = vld [vmem:[%s1 + $0xf8] sm:$0xff]
      %s206 = scalar_lea.vmem %s1, 256
      %v207 = vld [vmem:[%s206] sm:$0xff]
      %v208 = vld [vmem:[%s206 + $0x8] sm:$0xff]
      %v209 = vld [vmem:[%s206 + $0x10] sm:$0xff]
      %v210 = vld [vmem:[%s206 + $0x18] sm:$0xff]
      %v211 = vld [vmem:[%s206 + $0x20] sm:$0xff]
      %v212 = vld [vmem:[%s206 + $0x28] sm:$0xff]
      %v213 = vld [vmem:[%s206 + $0x30] sm:$0xff]
      %v214 = vld [vmem:[%s206 + $0x38] sm:$0xff]
      %v215 = vld [vmem:[%s206 + $0x40] sm:$0xff]
      %v216 = vld [vmem:[%s206 + $0x48] sm:$0xff]
      %v217 = vld [vmem:[%s206 + $0x50] sm:$0xff]
      %v218 = vld [vmem:[%s206 + $0x58] sm:$0xff]
      %v219 = vld [vmem:[%s206 + $0x60] sm:$0xff]
      %v220 = vld [vmem:[%s206 + $0x68] sm:$0xff]
      %v221 = vld [vmem:[%s206 + $0x70] sm:$0xff]
      %v222 = vld [vmem:[%s206 + $0x78] sm:$0xff]
      %v223 = vld [vmem:[%s206 + $0x80] sm:$0xff]
      %v224 = vld [vmem:[%s206 + $0x88] sm:$0xff]
      %v225 = vld [vmem:[%s206 + $0x90] sm:$0xff]
      %v226 = vld [vmem:[%s206 + $0x98] sm:$0xff]
      %v227 = vld [vmem:[%s206 + $0xa0] sm:$0xff]
      %v228 = vld [vmem:[%s206 + $0xa8] sm:$0xff]
      %v229 = vld [vmem:[%s206 + $0xb0] sm:$0xff]
      %v230 = vld [vmem:[%s206 + $0xb8] sm:$0xff]
      %v231 = vld [vmem:[%s206 + $0xc0] sm:$0xff]
      %v232 = vld [vmem:[%s206 + $0xc8] sm:$0xff]
      %v233 = vld [vmem:[%s206 + $0xd0] sm:$0xff]
      %v234 = vld [vmem:[%s206 + $0xd8] sm:$0xff]
      %v235 = vld [vmem:[%s206 + $0xe0] sm:$0xff]
      %v236 = vld [vmem:[%s206 + $0xe8] sm:$0xff]
      %v237 = vld [vmem:[%s206 + $0xf0] sm:$0xff]
      %v238 = vld [vmem:[%s206 + $0xf8] sm:$0xff]
      %s239 = scalar_lea.vmem %s1, 512
      %v240 = vld [vmem:[%s239] sm:$0xff]
      %v241 = vld [vmem:[%s239 + $0x8] sm:$0xff]
      %v242 = vld [vmem:[%s239 + $0x10] sm:$0xff]
      %v243 = vld [vmem:[%s239 + $0x18] sm:$0xff]
      %v244 = vld [vmem:[%s239 + $0x20] sm:$0xff]
      %v245 = vld [vmem:[%s239 + $0x28] sm:$0xff]
      %v246 = vld [vmem:[%s239 + $0x30] sm:$0xff]
      %v247 = vld [vmem:[%s239 + $0x38] sm:$0xff]
      %v248 = vld [vmem:[%s239 + $0x40] sm:$0xff]
      %v249 = vld [vmem:[%s239 + $0x48] sm:$0xff]
      %v250 = vld [vmem:[%s239 + $0x50] sm:$0xff]
      %v251 = vld [vmem:[%s239 + $0x58] sm:$0xff]
      %v252 = vld [vmem:[%s239 + $0x60] sm:$0xff]
      %v253 = vld [vmem:[%s239 + $0x68] sm:$0xff]
      %v254 = vld [vmem:[%s239 + $0x70] sm:$0xff]
      %v255 = vld [vmem:[%s239 + $0x78] sm:$0xff]
      %v256 = vld [vmem:[%s239 + $0x80] sm:$0xff]
      %v257 = vld [vmem:[%s239 + $0x88] sm:$0xff]
      %v258 = vld [vmem:[%s239 + $0x90] sm:$0xff]
      %v259 = vld [vmem:[%s239 + $0x98] sm:$0xff]
      %v260 = vld [vmem:[%s239 + $0xa0] sm:$0xff]
      %v261 = vld [vmem:[%s239 + $0xa8] sm:$0xff]
      %v262 = vld [vmem:[%s239 + $0xb0] sm:$0xff]
      %v263 = vld [vmem:[%s239 + $0xb8] sm:$0xff]
      %v264 = vld [vmem:[%s239 + $0xc0] sm:$0xff]
      %v265 = vld [vmem:[%s239 + $0xc8] sm:$0xff]
      %v266 = vld [vmem:[%s239 + $0xd0] sm:$0xff]
      %v267 = vld [vmem:[%s239 + $0xd8] sm:$0xff]
      %v268 = vld [vmem:[%s239 + $0xe0] sm:$0xff]
      %v269 = vld [vmem:[%s239 + $0xe8] sm:$0xff]
      %v270 = vld [vmem:[%s239 + $0xf0] sm:$0xff]
      %v271 = vld [vmem:[%s239 + $0xf8] sm:$0xff]
      %v274 = vunpack.c.l.b16 %v171
      %v275 = vunpack.c.h.b16 %v171
      %v276 = vunpack.c.l.b16 %v172
      %v277 = vunpack.c.h.b16 %v172
      %v278 = vpack.c.b16 %v276, %v274
      %v279 = vpack.c.b16 %v277, %v275
      %v281 = vshrl.u32 %v278, 16
      %v283 = vrot.slane %v281, 2
      %v284 = vshll.u32 %v278, 16
      %v286 = vrot.slane %v284, 3
      %v287 = vor.u32 %v283, %v286
      %v289 = vshrl.u32 %v279, 16
      %v291 = vrot.slane %v289, 2
      %v292 = vshll.u32 %v279, 16
      %v294 = vrot.slane %v292, 3
      %v295 = vor.u32 %v291, %v294
      %v330 = vunpack.c.l.b16 %v207
      %v331 = vunpack.c.h.b16 %v207
      %v332 = vunpack.c.l.b16 %v208
      %v333 = vunpack.c.h.b16 %v208
      %v334 = vunpack.c.l.b16 %v209
      %v335 = vunpack.c.h.b16 %v209
      %v336 = vunpack.c.l.b16 %v210
      %v337 = vunpack.c.h.b16 %v210
      %v338 = vunpack.c.l.b16 %v211
      %v339 = vunpack.c.h.b16 %v211
      %v340 = vunpack.c.l.b16 %v212
      %v341 = vunpack.c.h.b16 %v212
      %v342 = vunpack.c.l.b16 %v213
      %v343 = vunpack.c.h.b16 %v213
      %v344 = vunpack.c.l.b16 %v214
      %v345 = vunpack.c.h.b16 %v214
      %v346 = vunpack.c.l.b16 %v215
      %v347 = vunpack.c.h.b16 %v215
      %v348 = vunpack.c.l.b16 %v216
      %v349 = vunpack.c.h.b16 %v216
      %v350 = vunpack.c.l.b16 %v217
      %v351 = vunpack.c.h.b16 %v217
      %v352 = vunpack.c.l.b16 %v218
      %v353 = vunpack.c.h.b16 %v218
      %v354 = vunpack.c.l.b16 %v219
      %v355 = vunpack.c.h.b16 %v219
      %v356 = vunpack.c.l.b16 %v220
      %v357 = vunpack.c.h.b16 %v220
      %v358 = vunpack.c.l.b16 %v221
      %v359 = vunpack.c.h.b16 %v221
      %v360 = vunpack.c.l.b16 %v222
      %v361 = vunpack.c.h.b16 %v222
      %v362 = vunpack.c.l.b16 %v223
      %v363 = vunpack.c.h.b16 %v223
      %v364 = vunpack.c.l.b16 %v224
      %v365 = vunpack.c.h.b16 %v224
      %v366 = vunpack.c.l.b16 %v225
      %v367 = vunpack.c.h.b16 %v225
      %v368 = vunpack.c.l.b16 %v226
      %v369 = vunpack.c.h.b16 %v226
      %v370 = vunpack.c.l.b16 %v227
      %v371 = vunpack.c.h.b16 %v227
      %v372 = vunpack.c.l.b16 %v228
      %v373 = vunpack.c.h.b16 %v228
      %v374 = vunpack.c.l.b16 %v229
      %v375 = vunpack.c.h.b16 %v229
      %v376 = vunpack.c.l.b16 %v230
      %v377 = vunpack.c.h.b16 %v230
      %v378 = vunpack.c.l.b16 %v231
      %v379 = vunpack.c.h.b16 %v231
      %v380 = vunpack.c.l.b16 %v232
      %v381 = vunpack.c.h.b16 %v232
      %v382 = vunpack.c.l.b16 %v233
      %v383 = vunpack.c.h.b16 %v233
      %v384 = vunpack.c.l.b16 %v234
      %v385 = vunpack.c.h.b16 %v234
      %v386 = vunpack.c.l.b16 %v235
      %v387 = vunpack.c.h.b16 %v235
      %v388 = vunpack.c.l.b16 %v236
      %v389 = vunpack.c.h.b16 %v236
      %v390 = vunpack.c.l.b16 %v237
      %v391 = vunpack.c.h.b16 %v237
      %v392 = vunpack.c.l.b16 %v238
      %v393 = vunpack.c.h.b16 %v238
      %v394 = vpack.c.b16 %v332, %v330
      %v395 = vpack.c.b16 %v333, %v331
      %v396 = vpack.c.b16 %v336, %v334
      %v397 = vpack.c.b16 %v337, %v335
      %v398 = vpack.c.b16 %v340, %v338
      %v399 = vpack.c.b16 %v341, %v339
      %v400 = vpack.c.b16 %v344, %v342
      %v401 = vpack.c.b16 %v345, %v343
      %v402 = vpack.c.b16 %v348, %v346
      %v403 = vpack.c.b16 %v349, %v347
      %v404 = vpack.c.b16 %v352, %v350
      %v405 = vpack.c.b16 %v353, %v351
      %v406 = vpack.c.b16 %v356, %v354
      %v407 = vpack.c.b16 %v357, %v355
      %v408 = vpack.c.b16 %v360, %v358
      %v409 = vpack.c.b16 %v361, %v359
      %v410 = vpack.c.b16 %v364, %v362
      %v411 = vpack.c.b16 %v365, %v363
      %v412 = vpack.c.b16 %v368, %v366
      %v413 = vpack.c.b16 %v369, %v367
      %v414 = vpack.c.b16 %v372, %v370
      %v415 = vpack.c.b16 %v373, %v371
      %v416 = vpack.c.b16 %v376, %v374
      %v417 = vpack.c.b16 %v377, %v375
      %v418 = vpack.c.b16 %v380, %v378
      %v419 = vpack.c.b16 %v381, %v379
      %v420 = vpack.c.b16 %v384, %v382
      %v421 = vpack.c.b16 %v385, %v383
      %v422 = vpack.c.b16 %v388, %v386
      %v423 = vpack.c.b16 %v389, %v387
      %v424 = vpack.c.b16 %v392, %v390
      %v425 = vpack.c.b16 %v393, %v391
      %458 = vmatprep.subr.bf16.mxu0 %v409
      %459 = vmatpush1.bf16.msra.mxu0 %v408
      %460 = vmatprep.subr.bf16.mxu0 %v407
      %461 = vmatpush1.bf16.msra.mxu0 %v406
      %462 = vmatprep.subr.bf16.mxu0 %v405
      %463 = vmatpush1.bf16.msra.mxu0 %v404
      %464 = vmatprep.subr.bf16.mxu0 %v403
      %465 = vmatpush1.bf16.msra.mxu0 %v402
      %466 = vmatprep.subr.bf16.mxu0 %v401
      %467 = vmatpush1.bf16.msra.mxu0 %v400
      %468 = vmatprep.subr.bf16.mxu0 %v399
      %469 = vmatpush1.bf16.msra.mxu0 %v398
      %470 = vmatprep.subr.bf16.mxu0 %v397
      %471 = vmatpush1.bf16.msra.mxu0 %v396
      %472 = vmatprep.subr.bf16.mxu0 %v395
      %473 = vmatpush1.bf16.msra.mxu0 %v394
      %474 = vmatprep.subr.bf16.mxu0 %v425
      %475 = vmatpush2.bf16.msra.mxu0 %v424
      %476 = vmatprep.subr.bf16.mxu0 %v423
      %477 = vmatpush2.bf16.msra.mxu0 %v422
      %478 = vmatprep.subr.bf16.mxu0 %v421
      %479 = vmatpush2.bf16.msra.mxu0 %v420
      %480 = vmatprep.subr.bf16.mxu0 %v419
      %481 = vmatpush2.bf16.msra.mxu0 %v418
      %482 = vmatprep.subr.bf16.mxu0 %v417
      %483 = vmatpush2.bf16.msra.mxu0 %v416
      %484 = vmatprep.subr.bf16.mxu0 %v415
      %485 = vmatpush2.bf16.msra.mxu0 %v414
      %486 = vmatprep.subr.bf16.mxu0 %v413
      %487 = vmatpush2.bf16.msra.mxu0 %v412
      %488 = vmatprep.subr.bf16.mxu0 %v411
      %489 = vmatpush2.bf16.msra.mxu0 %v410
      %490 = vmatprep.mubr.bf16.mxu0 %v295
      %491 = vmatmul.mubr.bf16.gmra.mxu0 %v287
      %v492 = vpop.f32.mrf.mxu0
      %v493 = vadd.f32 0.0, %v492
      %v494 = vpop.f32.mrf.mxu0
      %v495 = vadd.f32 0.0, %v494
      %v496 = vpop.f32.mrf.mxu0
      %v497 = vpop.f32.mrf.mxu0
      %498 = vdwg.mxu0
      %v500 = vunpack.c.l.b16 %v169
      %v501 = vunpack.c.h.b16 %v169
      %v502 = vpack.c.b16 %v500, %v500
      %v503 = vpack.c.b16 %v501, %v501
      %v538 = vunpack.c.l.b16 %v174
      %v539 = vunpack.c.h.b16 %v174
      %v540 = vunpack.c.l.b16 %v175
      %v541 = vunpack.c.h.b16 %v175
      %v542 = vunpack.c.l.b16 %v176
      %v543 = vunpack.c.h.b16 %v176
      %v544 = vunpack.c.l.b16 %v177
      %v545 = vunpack.c.h.b16 %v177
      %v546 = vunpack.c.l.b16 %v178
      %v547 = vunpack.c.h.b16 %v178
      %v548 = vunpack.c.l.b16 %v179
      %v549 = vunpack.c.h.b16 %v179
      %v550 = vunpack.c.l.b16 %v180
      %v551 = vunpack.c.h.b16 %v180
      %v552 = vunpack.c.l.b16 %v181
      %v553 = vunpack.c.h.b16 %v181
      %v554 = vunpack.c.l.b16 %v182
      %v555 = vunpack.c.h.b16 %v182
      %v556 = vunpack.c.l.b16 %v183
      %v557 = vunpack.c.h.b16 %v183
      %v558 = vunpack.c.l.b16 %v184
      %v559 = vunpack.c.h.b16 %v184
      %v560 = vunpack.c.l.b16 %v185
      %v561 = vunpack.c.h.b16 %v185
      %v562 = vunpack.c.l.b16 %v186
      %v563 = vunpack.c.h.b16 %v186
      %v564 = vunpack.c.l.b16 %v187
      %v565 = vunpack.c.h.b16 %v187
      %v566 = vunpack.c.l.b16 %v188
      %v567 = vunpack.c.h.b16 %v188
      %v568 = vunpack.c.l.b16 %v189
      %v569 = vunpack.c.h.b16 %v189
      %v570 = vunpack.c.l.b16 %v190
      %v571 = vunpack.c.h.b16 %v190
      %v572 = vunpack.c.l.b16 %v191
      %v573 = vunpack.c.h.b16 %v191
      %v574 = vunpack.c.l.b16 %v192
      %v575 = vunpack.c.h.b16 %v192
      %v576 = vunpack.c.l.b16 %v193
      %v577 = vunpack.c.h.b16 %v193
      %v578 = vunpack.c.l.b16 %v194
      %v579 = vunpack.c.h.b16 %v194
      %v580 = vunpack.c.l.b16 %v195
      %v581 = vunpack.c.h.b16 %v195
      %v582 = vunpack.c.l.b16 %v196
      %v583 = vunpack.c.h.b16 %v196
      %v584 = vunpack.c.l.b16 %v197
      %v585 = vunpack.c.h.b16 %v197
      %v586 = vunpack.c.l.b16 %v198
      %v587 = vunpack.c.h.b16 %v198
      %v588 = vunpack.c.l.b16 %v199
      %v589 = vunpack.c.h.b16 %v199
      %v590 = vunpack.c.l.b16 %v200
      %v591 = vunpack.c.h.b16 %v200
      %v592 = vunpack.c.l.b16 %v201
      %v593 = vunpack.c.h.b16 %v201
      %v594 = vunpack.c.l.b16 %v202
      %v595 = vunpack.c.h.b16 %v202
      %v596 = vunpack.c.l.b16 %v203
      %v597 = vunpack.c.h.b16 %v203
      %v598 = vunpack.c.l.b16 %v204
      %v599 = vunpack.c.h.b16 %v204
      %v600 = vunpack.c.l.b16 %v205
      %v601 = vunpack.c.h.b16 %v205
      %v602 = vpack.c.b16 %v540, %v538
      %v603 = vpack.c.b16 %v541, %v539
      %v604 = vpack.c.b16 %v544, %v542
      %v605 = vpack.c.b16 %v545, %v543
      %v606 = vpack.c.b16 %v548, %v546
      %v607 = vpack.c.b16 %v549, %v547
      %v608 = vpack.c.b16 %v552, %v550
      %v609 = vpack.c.b16 %v553, %v551
      %v610 = vpack.c.b16 %v556, %v554
      %v611 = vpack.c.b16 %v557, %v555
      %v612 = vpack.c.b16 %v560, %v558
      %v613 = vpack.c.b16 %v561, %v559
      %v614 = vpack.c.b16 %v564, %v562
      %v615 = vpack.c.b16 %v565, %v563
      %v616 = vpack.c.b16 %v568, %v566
      %v617 = vpack.c.b16 %v569, %v567
      %v618 = vpack.c.b16 %v572, %v570
      %v619 = vpack.c.b16 %v573, %v571
      %v620 = vpack.c.b16 %v576, %v574
      %v621 = vpack.c.b16 %v577, %v575
      %v622 = vpack.c.b16 %v580, %v578
      %v623 = vpack.c.b16 %v581, %v579
      %v624 = vpack.c.b16 %v584, %v582
      %v625 = vpack.c.b16 %v585, %v583
      %v626 = vpack.c.b16 %v588, %v586
      %v627 = vpack.c.b16 %v589, %v587
      %v628 = vpack.c.b16 %v592, %v590
      %v629 = vpack.c.b16 %v593, %v591
      %v630 = vpack.c.b16 %v596, %v594
      %v631 = vpack.c.b16 %v597, %v595
      %v632 = vpack.c.b16 %v600, %v598
      %v633 = vpack.c.b16 %v601, %v599
      %666 = vmatprep.subr.bf16.mxu0 %v617
      %667 = vmatpush1.bf16.msra.mxu0 %v616
      %668 = vmatprep.subr.bf16.mxu0 %v615
      %669 = vmatpush1.bf16.msra.mxu0 %v614
      %670 = vmatprep.subr.bf16.mxu0 %v613
      %671 = vmatpush1.bf16.msra.mxu0 %v612
      %672 = vmatprep.subr.bf16.mxu0 %v611
      %673 = vmatpush1.bf16.msra.mxu0 %v610
      %674 = vmatprep.subr.bf16.mxu0 %v609
      %675 = vmatpush1.bf16.msra.mxu0 %v608
      %676 = vmatprep.subr.bf16.mxu0 %v607
      %677 = vmatpush1.bf16.msra.mxu0 %v606
      %678 = vmatprep.subr.bf16.mxu0 %v605
      %679 = vmatpush1.bf16.msra.mxu0 %v604
      %680 = vmatprep.subr.bf16.mxu0 %v603
      %681 = vmatpush1.bf16.msra.mxu0 %v602
      %682 = vmatprep.subr.bf16.mxu0 %v633
      %683 = vmatpush2.bf16.msra.mxu0 %v632
      %684 = vmatprep.subr.bf16.mxu0 %v631
      %685 = vmatpush2.bf16.msra.mxu0 %v630
      %686 = vmatprep.subr.bf16.mxu0 %v629
      %687 = vmatpush2.bf16.msra.mxu0 %v628
      %688 = vmatprep.subr.bf16.mxu0 %v627
      %689 = vmatpush2.bf16.msra.mxu0 %v626
      %690 = vmatprep.subr.bf16.mxu0 %v625
      %691 = vmatpush2.bf16.msra.mxu0 %v624
      %692 = vmatprep.subr.bf16.mxu0 %v623
      %693 = vmatpush2.bf16.msra.mxu0 %v622
      %694 = vmatprep.subr.bf16.mxu0 %v621
      %695 = vmatpush2.bf16.msra.mxu0 %v620
      %696 = vmatprep.subr.bf16.mxu0 %v619
      %697 = vmatpush2.bf16.msra.mxu0 %v618
      %698 = vmatprep.mubr.bf16.mxu0 %v503
      %699 = vmatmul.mubr.bf16.gmra.mxu0 %v502
      %v700 = vpop.f32.mrf.mxu0
      %v701 = vadd.f32 %v493, %v700
      %v702 = vpop.f32.mrf.mxu0
      %v703 = vadd.f32 %v495, %v702
      %v704 = vpop.f32.mrf.mxu0
      %v705 = vpop.f32.mrf.mxu0
      %706 = vdwg.mxu0
      %v708 = vunpack.c.l.b16 %v170
      %v709 = vunpack.c.h.b16 %v170
      %v710 = vpack.c.b16 %v708, %v708
      %v711 = vpack.c.b16 %v709, %v709
      %v713 = vshrl.u32 %v710, 16
      %v715 = vshll.u32 %v710, 16
      %v717 = vrot.slane %v715, 1
      %v718 = vor.u32 %v713, %v717
      %v720 = vshrl.u32 %v711, 16
      %v722 = vshll.u32 %v711, 16
      %v724 = vrot.slane %v722, 1
      %v725 = vor.u32 %v720, %v724
      %v760 = vunpack.c.l.b16 %v240
      %v761 = vunpack.c.h.b16 %v240
      %v762 = vunpack.c.l.b16 %v241
      %v763 = vunpack.c.h.b16 %v241
      %v764 = vunpack.c.l.b16 %v242
      %v765 = vunpack.c.h.b16 %v242
      %v766 = vunpack.c.l.b16 %v243
      %v767 = vunpack.c.h.b16 %v243
      %v768 = vunpack.c.l.b16 %v244
      %v769 = vunpack.c.h.b16 %v244
      %v770 = vunpack.c.l.b16 %v245
      %v771 = vunpack.c.h.b16 %v245
      %v772 = vunpack.c.l.b16 %v246
      %v773 = vunpack.c.h.b16 %v246
      %v774 = vunpack.c.l.b16 %v247
      %v775 = vunpack.c.h.b16 %v247
      %v776 = vunpack.c.l.b16 %v248
      %v777 = vunpack.c.h.b16 %v248
      %v778 = vunpack.c.l.b16 %v249
      %v779 = vunpack.c.h.b16 %v249
      %v780 = vunpack.c.l.b16 %v250
      %v781 = vunpack.c.h.b16 %v250
      %v782 = vunpack.c.l.b16 %v251
      %v783 = vunpack.c.h.b16 %v251
      %v784 = vunpack.c.l.b16 %v252
      %v785 = vunpack.c.h.b16 %v252
      %v786 = vunpack.c.l.b16 %v253
      %v787 = vunpack.c.h.b16 %v253
      %v788 = vunpack.c.l.b16 %v254
      %v789 = vunpack.c.h.b16 %v254
      %v790 = vunpack.c.l.b16 %v255
      %v791 = vunpack.c.h.b16 %v255
      %v792 = vunpack.c.l.b16 %v256
      %v793 = vunpack.c.h.b16 %v256
      %v794 = vunpack.c.l.b16 %v257
      %v795 = vunpack.c.h.b16 %v257
      %v796 = vunpack.c.l.b16 %v258
      %v797 = vunpack.c.h.b16 %v258
      %v798 = vunpack.c.l.b16 %v259
      %v799 = vunpack.c.h.b16 %v259
      %v800 = vunpack.c.l.b16 %v260
      %v801 = vunpack.c.h.b16 %v260
      %v802 = vunpack.c.l.b16 %v261
      %v803 = vunpack.c.h.b16 %v261
      %v804 = vunpack.c.l.b16 %v262
      %v805 = vunpack.c.h.b16 %v262
      %v806 = vunpack.c.l.b16 %v263
      %v807 = vunpack.c.h.b16 %v263
      %v808 = vunpack.c.l.b16 %v264
      %v809 = vunpack.c.h.b16 %v264
      %v810 = vunpack.c.l.b16 %v265
      %v811 = vunpack.c.h.b16 %v265
      %v812 = vunpack.c.l.b16 %v266
      %v813 = vunpack.c.h.b16 %v266
      %v814 = vunpack.c.l.b16 %v267
      %v815 = vunpack.c.h.b16 %v267
      %v816 = vunpack.c.l.b16 %v268
      %v817 = vunpack.c.h.b16 %v268
      %v818 = vunpack.c.l.b16 %v269
      %v819 = vunpack.c.h.b16 %v269
      %v820 = vunpack.c.l.b16 %v270
      %v821 = vunpack.c.h.b16 %v270
      %v822 = vunpack.c.l.b16 %v271
      %v823 = vunpack.c.h.b16 %v271
      %v824 = vpack.c.b16 %v762, %v760
      %v825 = vpack.c.b16 %v763, %v761
      %v826 = vpack.c.b16 %v766, %v764
      %v827 = vpack.c.b16 %v767, %v765
      %v828 = vpack.c.b16 %v770, %v768
      %v829 = vpack.c.b16 %v771, %v769
      %v830 = vpack.c.b16 %v774, %v772
      %v831 = vpack.c.b16 %v775, %v773
      %v832 = vpack.c.b16 %v778, %v776
      %v833 = vpack.c.b16 %v779, %v777
      %v834 = vpack.c.b16 %v782, %v780
      %v835 = vpack.c.b16 %v783, %v781
      %v836 = vpack.c.b16 %v786, %v784
      %v837 = vpack.c.b16 %v787, %v785
      %v838 = vpack.c.b16 %v790, %v788
      %v839 = vpack.c.b16 %v791, %v789
      %v840 = vpack.c.b16 %v794, %v792
      %v841 = vpack.c.b16 %v795, %v793
      %v842 = vpack.c.b16 %v798, %v796
      %v843 = vpack.c.b16 %v799, %v797
      %v844 = vpack.c.b16 %v802, %v800
      %v845 = vpack.c.b16 %v803, %v801
      %v846 = vpack.c.b16 %v806, %v804
      %v847 = vpack.c.b16 %v807, %v805
      %v848 = vpack.c.b16 %v810, %v808
      %v849 = vpack.c.b16 %v811, %v809
      %v850 = vpack.c.b16 %v814, %v812
      %v851 = vpack.c.b16 %v815, %v813
      %v852 = vpack.c.b16 %v818, %v816
      %v853 = vpack.c.b16 %v819, %v817
      %v854 = vpack.c.b16 %v822, %v820
      %v855 = vpack.c.b16 %v823, %v821
      %888 = vmatprep.subr.bf16.mxu0 %v839
      %889 = vmatpush1.bf16.msra.mxu0 %v838
      %890 = vmatprep.subr.bf16.mxu0 %v837
      %891 = vmatpush1.bf16.msra.mxu0 %v836
      %892 = vmatprep.subr.bf16.mxu0 %v835
      %893 = vmatpush1.bf16.msra.mxu0 %v834
      %894 = vmatprep.subr.bf16.mxu0 %v833
      %895 = vmatpush1.bf16.msra.mxu0 %v832
      %896 = vmatprep.subr.bf16.mxu0 %v831
      %897 = vmatpush1.bf16.msra.mxu0 %v830
      %898 = vmatprep.subr.bf16.mxu0 %v829
      %899 = vmatpush1.bf16.msra.mxu0 %v828
      %900 = vmatprep.subr.bf16.mxu0 %v827
      %901 = vmatpush1.bf16.msra.mxu0 %v826
      %902 = vmatprep.subr.bf16.mxu0 %v825
      %903 = vmatpush1.bf16.msra.mxu0 %v824
      %904 = vmatprep.subr.bf16.mxu0 %v855
      %905 = vmatpush2.bf16.msra.mxu0 %v854
      %906 = vmatprep.subr.bf16.mxu0 %v853
      %907 = vmatpush2.bf16.msra.mxu0 %v852
      %908 = vmatprep.subr.bf16.mxu0 %v851
      %909 = vmatpush2.bf16.msra.mxu0 %v850
      %910 = vmatprep.subr.bf16.mxu0 %v849
      %911 = vmatpush2.bf16.msra.mxu0 %v848
      %912 = vmatprep.subr.bf16.mxu0 %v847
      %913 = vmatpush2.bf16.msra.mxu0 %v846
      %914 = vmatprep.subr.bf16.mxu0 %v845
      %915 = vmatpush2.bf16.msra.mxu0 %v844
      %916 = vmatprep.subr.bf16.mxu0 %v843
      %917 = vmatpush2.bf16.msra.mxu0 %v842
      %918 = vmatprep.subr.bf16.mxu0 %v841
      %919 = vmatpush2.bf16.msra.mxu0 %v840
      %920 = vmatprep.mubr.bf16.mxu0 %v725
      %921 = vmatmul.mubr.bf16.gmra.mxu0 %v718
      %v922 = vpop.f32.mrf.mxu0
      %v923 = vadd.f32 0.0, %v922
      %v924 = vpop.f32.mrf.mxu0
      %v925 = vadd.f32 0.0, %v924
      %v926 = vpop.f32.mrf.mxu0
      %v927 = vpop.f32.mrf.mxu0
      %928 = vdwg.mxu0
      %v929 = vadd.f32 %v701, %v923
      %v930 = vadd.f32 %v703, %v925
      %931 = vmatprep.subr.bf16.mxu0 %v409
      %932 = vmatpush1.bf16.msra.mxu0 %v408
      %933 = vmatprep.subr.bf16.mxu0 %v407
      %934 = vmatpush1.bf16.msra.mxu0 %v406
      %935 = vmatprep.subr.bf16.mxu0 %v405
      %936 = vmatpush1.bf16.msra.mxu0 %v404
      %937 = vmatprep.subr.bf16.mxu0 %v403
      %938 = vmatpush1.bf16.msra.mxu0 %v402
      %939 = vmatprep.subr.bf16.mxu0 %v401
      %940 = vmatpush1.bf16.msra.mxu0 %v400
      %941 = vmatprep.subr.bf16.mxu0 %v399
      %942 = vmatpush1.bf16.msra.mxu0 %v398
      %943 = vmatprep.subr.bf16.mxu0 %v397
      %944 = vmatpush1.bf16.msra.mxu0 %v396
      %945 = vmatprep.subr.bf16.mxu0 %v395
      %946 = vmatpush1.bf16.msra.mxu0 %v394
      %947 = vmatprep.subr.bf16.mxu0 %v425
      %948 = vmatpush2.bf16.msra.mxu0 %v424
      %949 = vmatprep.subr.bf16.mxu0 %v423
      %950 = vmatpush2.bf16.msra.mxu0 %v422
      %951 = vmatprep.subr.bf16.mxu0 %v421
      %952 = vmatpush2.bf16.msra.mxu0 %v420
      %953 = vmatprep.subr.bf16.mxu0 %v419
      %954 = vmatpush2.bf16.msra.mxu0 %v418
      %955 = vmatprep.subr.bf16.mxu0 %v417
      %956 = vmatpush2.bf16.msra.mxu0 %v416
      %957 = vmatprep.subr.bf16.mxu0 %v415
      %958 = vmatpush2.bf16.msra.mxu0 %v414
      %959 = vmatprep.subr.bf16.mxu0 %v413
      %960 = vmatpush2.bf16.msra.mxu0 %v412
      %961 = vmatprep.subr.bf16.mxu0 %v411
      %962 = vmatpush2.bf16.msra.mxu0 %v410
      %963 = vmatprep.mubr.bf16.mxu0 %v725
      %964 = vmatmul.mubr.bf16.gmra.mxu0 %v718
      %v965 = vpop.f32.mrf.mxu0
      %v966 = vadd.f32 0.0, %v965
      %v967 = vpop.f32.mrf.mxu0
      %v968 = vadd.f32 0.0, %v967
      %v969 = vpop.f32.mrf.mxu0
      %v970 = vpop.f32.mrf.mxu0
      %971 = vdwg.mxu0
      %972 = vmatprep.subr.bf16.mxu0 %v617
      %973 = vmatpush1.bf16.msra.mxu0 %v616
      %974 = vmatprep.subr.bf16.mxu0 %v615
      %975 = vmatpush1.bf16.msra.mxu0 %v614
      %976 = vmatprep.subr.bf16.mxu0 %v613
      %977 = vmatpush1.bf16.msra.mxu0 %v612
      %978 = vmatprep.subr.bf16.mxu0 %v611
      %979 = vmatpush1.bf16.msra.mxu0 %v610
      %980 = vmatprep.subr.bf16.mxu0 %v609
      %981 = vmatpush1.bf16.msra.mxu0 %v608
      %982 = vmatprep.subr.bf16.mxu0 %v607
      %983 = vmatpush1.bf16.msra.mxu0 %v606
      %984 = vmatprep.subr.bf16.mxu0 %v605
      %985 = vmatpush1.bf16.msra.mxu0 %v604
      %986 = vmatprep.subr.bf16.mxu0 %v603
      %987 = vmatpush1.bf16.msra.mxu0 %v602
      %988 = vmatprep.subr.bf16.mxu0 %v633
      %989 = vmatpush2.bf16.msra.mxu0 %v632
      %990 = vmatprep.subr.bf16.mxu0 %v631
      %991 = vmatpush2.bf16.msra.mxu0 %v630
      %992 = vmatprep.subr.bf16.mxu0 %v629
      %993 = vmatpush2.bf16.msra.mxu0 %v628
      %994 = vmatprep.subr.bf16.mxu0 %v627
      %995 = vmatpush2.bf16.msra.mxu0 %v626
      %996 = vmatprep.subr.bf16.mxu0 %v625
      %997 = vmatpush2.bf16.msra.mxu0 %v624
      %998 = vmatprep.subr.bf16.mxu0 %v623
      %999 = vmatpush2.bf16.msra.mxu0 %v622
      %1000 = vmatprep.subr.bf16.mxu0 %v621
      %1001 = vmatpush2.bf16.msra.mxu0 %v620
      %1002 = vmatprep.subr.bf16.mxu0 %v619
      %1003 = vmatpush2.bf16.msra.mxu0 %v618
      %1004 = vmatprep.mubr.bf16.mxu0 %v295
      %1005 = vmatmul.mubr.bf16.gmra.mxu0 %v287
      %v1006 = vpop.f32.mrf.mxu0
      %v1007 = vadd.f32 %v966, %v1006
      %v1008 = vpop.f32.mrf.mxu0
      %v1009 = vadd.f32 %v968, %v1008
      %v1010 = vpop.f32.mrf.mxu0
      %v1011 = vpop.f32.mrf.mxu0
      %1012 = vdwg.mxu0
      %v1014 = vunpack.c.l.b16 %v173
      %v1015 = vunpack.c.h.b16 %v173
      %v1016 = vpack.c.b16 %v276, %v1014
      %v1017 = vpack.c.b16 %v277, %v1015
      %v1018 = vrot.slane %v1016, 3
      %v1019 = vrot.slane %v1017, 3
      %1022 = vmatprep.subr.bf16.mxu0 %v839
      %1023 = vmatpush1.bf16.msra.mxu0 %v838
      %1024 = vmatprep.subr.bf16.mxu0 %v837
      %1025 = vmatpush1.bf16.msra.mxu0 %v836
      %1026 = vmatprep.subr.bf16.mxu0 %v835
      %1027 = vmatpush1.bf16.msra.mxu0 %v834
      %1028 = vmatprep.subr.bf16.mxu0 %v833
      %1029 = vmatpush1.bf16.msra.mxu0 %v832
      %1030 = vmatprep.subr.bf16.mxu0 %v831
      %1031 = vmatpush1.bf16.msra.mxu0 %v830
      %1032 = vmatprep.subr.bf16.mxu0 %v829
      %1033 = vmatpush1.bf16.msra.mxu0 %v828
      %1034 = vmatprep.subr.bf16.mxu0 %v827
      %1035 = vmatpush1.bf16.msra.mxu0 %v826
      %1036 = vmatprep.subr.bf16.mxu0 %v825
      %1037 = vmatpush1.bf16.msra.mxu0 %v824
      %1038 = vmatprep.subr.bf16.mxu0 %v855
      %1039 = vmatpush2.bf16.msra.mxu0 %v854
      %1040 = vmatprep.subr.bf16.mxu0 %v853
      %1041 = vmatpush2.bf16.msra.mxu0 %v852
      %1042 = vmatprep.subr.bf16.mxu0 %v851
      %1043 = vmatpush2.bf16.msra.mxu0 %v850
      %1044 = vmatprep.subr.bf16.mxu0 %v849
      %1045 = vmatpush2.bf16.msra.mxu0 %v848
      %1046 = vmatprep.subr.bf16.mxu0 %v847
      %1047 = vmatpush2.bf16.msra.mxu0 %v846
      %1048 = vmatprep.subr.bf16.mxu0 %v845
      %1049 = vmatpush2.bf16.msra.mxu0 %v844
      %1050 = vmatprep.subr.bf16.mxu0 %v843
      %1051 = vmatpush2.bf16.msra.mxu0 %v842
      %1052 = vmatprep.subr.bf16.mxu0 %v841
      %1053 = vmatpush2.bf16.msra.mxu0 %v840
      %1054 = vmatprep.mubr.bf16.mxu0 %v1019
      %1055 = vmatmul.mubr.bf16.gmra.mxu0 %v1018
      %v1056 = vpop.f32.mrf.mxu0
      %v1057 = vadd.f32 0.0, %v1056
      %v1058 = vpop.f32.mrf.mxu0
      %v1059 = vadd.f32 0.0, %v1058
      %v1060 = vpop.f32.mrf.mxu0
      %v1061 = vpop.f32.mrf.mxu0
      %1062 = vdwg.mxu0
      %v1063 = vadd.f32 %v1007, %v1057
      %v1064 = vadd.f32 %v1009, %v1059
      %v1065 = vmax.f32 %v929, %v1063
      %v1066 = vmax.f32 %v930, %v1064
      %v1067 = vmax.f32 %v1065, %v1066
      %v1068 = vld [vmem:[%s2] sm:$0x1]
      %v1070 = vlaneseq
      %v1071 = vshrl.u32 %v1070, 7
      %v1072 = vsub.s32 0, %v1071
      %v1073 = vrot.slane %v1068, %v1072
      %v1075 = vadd.f32 %v1067, %v1073
      %v1076 = vmax.f32 %v1075, 0.0
      %v1077 = vpack.c.bf16 %v1076, %v1076
      %1078 = vst [vmem:[%s168] sm:$0x3] %v1077
      %p1079 = scmp.lt.s32.totalorder %s14, 1
      %s1080 = scalar_select %p1079, %s14, 1
      %s1081 = smul.addr %s1080, 2
      %s1082 = scalar_lea.vmem %s3, %s1081
      // Predicated region
      $region33: #{simple_cnn_forward.4} parent=31 // pred_check
        %p1083 = pneg %p100
      $region34: #{simple_cnn_forward.4} parent=31 // pred_check_branch
        %1085 = sbr.rel (%p1083) target = $region36
      $region35: #{simple_cnn_forward.4} parent=31 // pred_region
        _
      $region36: #{simple_cnn_forward.4} parent=31 // pred_fallthru
        _
    $region32: #{simple_cnn_forward.4} parent=5 // pred_fallthru
      _
    %p1086 = scmp.le.s32.totalorder 2, %s9
    // Predicated region
    $region37: #{simple_cnn_forward.4} parent=5 // pred_check
      %p1087 = pneg %p1086
    $region38: #{simple_cnn_forward.4} parent=5 // pred_check_branch
      %1089 = sbr.rel (%p1087) target = $region40
    $region39: #{simple_cnn_forward.4} parent=5 // pred_region
      %s1090 = ssub.s32 %s9, 2
      // Predicated region
      $region41: #{simple_cnn_forward.4} parent=39 // pred_check
        %p1091 = pneg %p106
      $region42: #{simple_cnn_forward.4} parent=39 // pred_check_branch
        %1093 = sbr.rel (%p1091) target = $region44
      $region43: #{simple_cnn_forward.4} parent=39 // pred_region
        %p1094 = scmp.lt.s32.totalorder %s15, 1
        %s1095 = scalar_select %p1094, %s15, 1
        %s1096 = smul.addr %s1095, 2
        %s1097 = scalar_lea.vmem %s3, %s1096
      $region44: #{simple_cnn_forward.4} parent=39 // pred_fallthru
        _
    $region40: #{simple_cnn_forward.4} parent=5 // pred_fallthru
      _
  $region6: #{simple_cnn_forward.4} parent=0 // loop_footer
    %s13 = sadd.s32 1, %s9
  $region7: #{simple_cnn_forward.4} parent=0 // loop_footer_branch
    %8 = sbr.rel target = $region3
  $region8: #{simple_cnn_forward.4} parent=0 // loop_exit
    _

</llo_original>
